<compile_context>
chip_gen: v7x
topology: tpu7x:2x2x1
jax: 0.10.0
libtpu: 0.0.40
codegen_flags: <defaults>
</compile_context>

<pallas_src>
import functools

import jax
import jax.numpy as jnp
from jax.experimental import pallas as pl
from jax.experimental.pallas import tpu as pltpu


# ----------------------------------------------------------------------------
# Generation-aware budgets / tile picks.
# ----------------------------------------------------------------------------
@functools.lru_cache(maxsize=None)
def _vmem_limit_bytes():
    """Scoped-VMEM budget: ~half of physical VMEM (v5e/v6e -> 64 MiB, v7x ->
    32 MiB per TensorCore).  Actual per-step footprint of these kernels is only
    a few MiB, so this never constrains the chosen block sizes."""
    try:
        return int(min(pltpu.get_tpu_info().vmem_capacity_bytes // 2,
                       64 * 1024 * 1024))
    except Exception:  # API shape differs / no query available -> conservative
        return 32 * 1024 * 1024


def _pick_block_b(batch):
    """Images per conv grid step: big enough to amortize the ~0.35us/step cost,
    small enough to keep >= 2 grid steps so ("parallel",) feeds both v7x
    TensorCores.  Per-image footprint is ~2.5 MiB at 84x84x9, so 4 fits all
    generations."""
    for bt in (4, 2):
        if batch % bt == 0 and batch // bt >= 2:
            return bt
    return 1


def _pick_block_m(batch):
    """Trunk rows per grid step (second-last block dim: multiple of 8 or the
    full batch)."""
    if batch <= 128:
        return batch
    for m in (128, 64, 32, 16, 8):
        if batch % m == 0:
            return m
    return batch


# ----------------------------------------------------------------------------
# Fused conv stack: 4x (3x3 conv + bias + ReLU), transposed-GEMM form.
# ----------------------------------------------------------------------------
def _convstack_kernel(p_ref, w1_ref, b1_ref, w2_ref, b2_ref, w3_ref, b3_ref,
                      w4_ref, b4_ref, h_ref, a1_ref, a2_ref, a3_ref, *,
                      bt, n1, row_w):
    """Activations live in VMEM as (bt, 32, L) bf16, L = n1 + 2*row_w + 2:
    channels on the sublane axis (exactly 32 rows, no lane padding), the full
    carried (H1 x W1) spatial grid on the lane axis (dense loads/stores).
    A 3x3 tap of the next layer is a static lane-offset slice, and each conv
    is one (32, 9*Cin) @ (9*Cin, n1) MXU matmul per image per layer.  Columns
    outside each layer's shrinking valid region hold don't-care values that
    provably never feed a valid output; the wrapper crops them off."""
    offs = [kh * row_w + kw for kh in range(3) for kw in range(3)]
    tail = a1_ref.shape[2] - n1

    # Keep the small slack tail (read only by don't-care output columns)
    # deterministic.  ~17 KiB of stores per step: noise.
    zt = jnp.zeros((bt, 32, tail), jnp.bfloat16)
    a1_ref[:, :, n1:] = zt
    a2_ref[:, :, n1:] = zt
    a3_ref[:, :, n1:] = zt

    def conv(patch, w_ref, b_ref):
        # patch: (9*Cin, n1) bf16.  Bias + ReLU stay f32 (v5e VPU has no bf16).
        y = jnp.dot(w_ref[...], patch, preferred_element_type=jnp.float32)
        return jnp.maximum(y + b_ref[...], 0.0)

    def taps(a_ref, i):
        # Nine lane-offset slices stacked on the sublane axis (32-row pieces,
        # tile-aligned) -> the (9*32, n1) bf16 im2col patch; no masked ops.
        return jnp.concatenate([a_ref[i, :, o:o + n1] for o in offs], axis=0)

    for i in range(bt):                        # static unroll over block images
        y = conv(p_ref[i], w1_ref, b1_ref)     # layer 1 (pre-built im2col input)
        a1_ref[i, :, :n1] = y.astype(jnp.bfloat16)
        y = conv(taps(a1_ref, i), w2_ref, b2_ref)
        a2_ref[i, :, :n1] = y.astype(jnp.bfloat16)
        y = conv(taps(a2_ref, i), w3_ref, b3_ref)
        a3_ref[i, :, :n1] = y.astype(jnp.bfloat16)
        y = conv(taps(a3_ref, i), w4_ref, b4_ref)
        h_ref[i, :, :] = y.astype(jnp.bfloat16)      # lane-dense (n1-wide) store


def conv_stack(p1, conv_ws, conv_bs, *, n1, row_w, block_b):
    """p1: (B, 9*Cin, n1) bf16 layer-1 im2col patches of RAW pixel values (the
    /255 - 0.5 pre-scale is folded into w1/b1).  Returns the carried layer-4
    activation grid (B, 32, n1) bf16 (NCHW order; don't-care columns included,
    cropped by the caller)."""
    B, kin, _ = p1.shape
    L = n1 + 2 * row_w + 2            # slack so every tap slice stays in bounds
    kernel = functools.partial(_convstack_kernel, bt=block_b, n1=n1,
                               row_w=row_w)
    w1, w2, w3, w4 = conv_ws
    b1, b2, b3, b4 = conv_bs

    def full(arr):
        return pl.BlockSpec(arr.shape, lambda b: (0, 0))

    return pl.pallas_call(
        kernel,
        out_shape=jax.ShapeDtypeStruct((B, 32, n1), jnp.bfloat16),
        grid=(B // block_b,),
        in_specs=[pl.BlockSpec((block_b, kin, n1), lambda b: (b, 0, 0)),
                  full(w1), full(b1), full(w2), full(b2),
                  full(w3), full(b3), full(w4), full(b4)],
        out_specs=pl.BlockSpec((block_b, 32, n1), lambda b: (b, 0, 0)),
        scratch_shapes=[pltpu.VMEM((block_b, 32, L), jnp.bfloat16),
                        pltpu.VMEM((block_b, 32, L), jnp.bfloat16),
                        pltpu.VMEM((block_b, 32, L), jnp.bfloat16)],
        compiler_params=pltpu.CompilerParams(
            dimension_semantics=("parallel",),
            vmem_limit_bytes=_vmem_limit_bytes()),
    )(p1, w1, b1, w2, b2, w3, b3, w4, b4)


# ----------------------------------------------------------------------------
# Trunk: Linear -> LayerNorm(eps=1e-5) -> Tanh, fused, gridded over batch rows.
# ----------------------------------------------------------------------------
def _trunk_kernel(h_ref, w_ref, b_ref, g_ref, beta_ref, o_ref):
    y = jnp.dot(h_ref[...], w_ref[...],
                preferred_element_type=jnp.float32) + b_ref[...]
    mean = jnp.mean(y, axis=-1, keepdims=True)
    var = jnp.mean(jnp.square(y - mean), axis=-1, keepdims=True)
    yn = (y - mean) * jax.lax.rsqrt(var + 1e-5)
    o_ref[...] = jnp.tanh(yn * g_ref[...] + beta_ref[...])


def trunk(h, w, b, gamma, beta):
    """h: (B, repr_dim) bf16; w: (repr_dim, D) bf16 -> (B, D) f32."""
    B, K = h.shape
    D = w.shape[1]
    block_m = _pick_block_m(B)
    # The bf16 weight (~5 MiB at 84x84 / feature_dim~50) and a 128-row h block
    # (~10 MiB) stay VMEM-resident.
    # TODO(synk): K-tile with an f32 accumulator (padding repr_dim to a
    # multiple of 128) if feature_dim / repr_dim ever outgrow the VMEM budget.
    assert (K * D + 2 * block_m * K) * 2 < _vmem_limit_bytes(), "add K-tiling"
    return pl.pallas_call(
        _trunk_kernel,
        out_shape=jax.ShapeDtypeStruct((B, D), jnp.float32),
        grid=(B // block_m,),
        in_specs=[pl.BlockSpec((block_m, K), lambda m: (m, 0)),
                  pl.BlockSpec((K, D), lambda m: (0, 0)),
                  pl.BlockSpec((1, D), lambda m: (0, 0)),
                  pl.BlockSpec((1, D), lambda m: (0, 0)),
                  pl.BlockSpec((1, D), lambda m: (0, 0))],
        out_specs=pl.BlockSpec((block_m, D), lambda m: (m, 0)),
        compiler_params=pltpu.CompilerParams(
            dimension_semantics=("parallel",),
            vmem_limit_bytes=_vmem_limit_bytes()),
    )(h, w, b, gamma, beta)


# ----------------------------------------------------------------------------
# XLA-side layer-1 im2col (tiny; keeps the kernel free of strided tap reads).
# ----------------------------------------------------------------------------
def _im2col_stride2_nchw(x_nchw, h1, w1):
    """(B, C, H, W) raw pixels -> (B, 9*C, h1*w1) bf16 patches; patch-row order
    (kh, kw, cin), columns in (ho, wo) row-major order."""
    b, c = x_nchw.shape[0], x_nchw.shape[1]
    taps = [x_nchw[:, :, kh::2, kw::2][:, :, :h1, :w1]
            for kh in range(3) for kw in range(3)]
    p = jnp.stack(taps, axis=1)                       # (B, 9, C, h1, w1)
    return p.reshape(b, 9 * c, h1 * w1).astype(jnp.bfloat16)


# ----------------------------------------------------------------------------
# Encoder wrapper (deterministic synthetic parameters, PyTorch layouts at init).
# ----------------------------------------------------------------------------
class EncoderPallas:
    def __init__(self, obs_shape, feature_dim, stochastic, log_std_bounds, key):
        assert len(obs_shape) == 3
        C, H, W = obs_shape
        self.stochastic = stochastic
        self.log_std_bounds = log_std_bounds
        self.feature_dim = feature_dim

        # Conv arithmetic (matches 32*35*35 @ 84 and 32*25*25 @ 64).
        self.H1, self.W1 = (H - 3) // 2 + 1, (W - 3) // 2 + 1
        self.H4, self.W4 = self.H1 - 6, self.W1 - 6
        self.n1 = self.H1 * self.W1
        self.repr_dim = 32 * self.H4 * self.W4
        out_dim = 2 * feature_dim if stochastic else feature_dim
        self.out_dim = out_dim

        ks = jax.random.split(key, 5)

        # Synthetic params in PyTorch layouts: Conv2d (Cout, Cin, 3, 3),
        # Linear (out_features, in_features).
        def conv_w_pt(k, cin):
            return (jax.random.normal(k, (32, cin, 3, 3), jnp.float32)
                    / jnp.sqrt(9.0 * cin))

        w_pt = [conv_w_pt(ks[0], C), conv_w_pt(ks[1], 32),
                conv_w_pt(ks[2], 32), conv_w_pt(ks[3], 32)]
        b_pt = [jnp.zeros((32,), jnp.float32) for _ in range(4)]
        tw_pt = (jax.random.normal(ks[4], (out_dim, self.repr_dim), jnp.float32)
                 / jnp.sqrt(float(self.repr_dim)))
        tb_pt = jnp.zeros((out_dim,), jnp.float32)

        # ---- kernel-side parameters ------------------------------------
        # Fold "obs/255 - 0.5" into conv1 (exact by linearity):
        #   conv1(x/255 - 0.5) == conv1'(x)  with  w1' = w1/255  and
        #   b1' = b1 - 0.5 * sum_{cin,kh,kw} w1.
        w1_scaled = w_pt[0] / 255.0
        b1_folded = b_pt[0] - 0.5 * jnp.sum(w_pt[0], axis=(1, 2, 3))

        def to_gemm(w):  # (Cout, Cin, 3, 3) -> (Cout, 9*Cin) bf16, (kh, kw, cin)
            cout, cin = w.shape[0], w.shape[1]
            return (jnp.transpose(w, (0, 2, 3, 1))
                    .reshape(cout, 9 * cin).astype(jnp.bfloat16))

        self.conv_ws = [to_gemm(w1_scaled)] + [to_gemm(w) for w in w_pt[1:]]
        self.conv_bs = ([b1_folded.reshape(32, 1)]
                        + [b.reshape(32, 1) for b in b_pt[1:]])

        # Trunk: the conv kernel emits features in NCHW flatten order (same as
        # PyTorch), so the Linear weight needs no permutation at all.
        self.trunk_w = tw_pt.T.astype(jnp.bfloat16)            # (repr_dim, D)
        self.trunk_b = tb_pt.reshape(1, out_dim)
        self.ln_g = jnp.ones((1, out_dim), jnp.float32)
        self.ln_b = jnp.zeros((1, out_dim), jnp.float32)

        # f32 PyTorch-layout copies for the in-script reference check.
        self._ref_conv_w = w_pt
        self._ref_conv_b = b_pt
        self._ref_trunk_w = tw_pt.T
        self._ref_trunk_b = tb_pt

    def conv_features(self, obs_nchw):
        """Raw obs (B, C, H, W) -> flattened conv features (B, repr_dim) bf16
        in PyTorch NCHW flatten order."""
        B = obs_nchw.shape[0]
        x = obs_nchw.astype(jnp.float32)
        p1 = _im2col_stride2_nchw(x, self.H1, self.W1)
        h_full = conv_stack(p1, self.conv_ws, self.conv_bs, n1=self.n1,
                            row_w=self.W1, block_b=_pick_block_b(B))
        # Crop the valid (H4, W4) block of the carried (H1, W1) grid; already
        # NCHW ordered, so this reshape IS PyTorch's flatten (free in XLA).
        h = h_full.reshape(B, 32, self.H1, self.W1)[:, :, :self.H4, :self.W4]
        return h.reshape(B, self.repr_dim)

    def __call__(self, obs_nchw, sample_key=None):
        h = self.conv_features(obs_nchw)
        z = trunk(h, self.trunk_w, self.trunk_b, self.ln_g, self.ln_b)
        if self.stochastic:
            mu, log_std = jnp.split(z, 2, axis=-1)
            log_std = jnp.tanh(log_std)
            lo, hi = self.log_std_bounds
            log_std = lo + 0.5 * (hi - lo) * (log_std + 1.0)
            std = jnp.exp(log_std)
            # TODO(synk): torchd.Normal(mu, std).sample() is drawn here with
            # the JAX PRNG (same distribution, different RNG stream than torch).
            eps = jax.random.normal(sample_key, mu.shape, mu.dtype)
            z = mu + std * eps
        return z


# ----------------------------------------------------------------------------
# Pure-XLA f32 reference (PyTorch layouts/ordering) for correctness checks.
# ----------------------------------------------------------------------------
def reference_forward(enc, obs_nchw, return_features=False):
    x = obs_nchw.astype(jnp.float32) / 255.0 - 0.5
    for w, b, s in zip(enc._ref_conv_w, enc._ref_conv_b, (2, 1, 1, 1)):
        x = jax.lax.conv_general_dilated(
            x, w, (s, s), "VALID", dimension_numbers=("NCHW", "OIHW", "NCHW"))
        x = jnp.maximum(x + b.reshape(1, -1, 1, 1), 0.0)
    h = x.reshape(x.shape[0], -1)                          # NCHW flatten
    y = h @ enc._ref_trunk_w + enc._ref_trunk_b
    mean = jnp.mean(y, axis=-1, keepdims=True)
    var = jnp.mean(jnp.square(y - mean), axis=-1, keepdims=True)
    z = jnp.tanh((y - mean) * jax.lax.rsqrt(var + 1e-5))
    return (z, h) if return_features else z


if __name__ == "__main__":
    key = jax.random.PRNGKey(0)
    k_param, k_obs, k_sample = jax.random.split(key, 3)

    # Small shapes consistent with the module: NCHW obs, integer pixel values.
    B, C, H, W = 2, 4, 24, 24
    obs = jax.random.randint(k_obs, (B, C, H, W), 0, 256).astype(jnp.float32)

    # Deterministic path: convnet -> flatten -> Linear -> LayerNorm -> Tanh.
    enc = EncoderPallas(obs_shape=(C, H, W), feature_dim=32,
                        stochastic=False, log_std_bounds=(-10.0, 2.0),
                        key=k_param)
    z = enc(obs)
    jax.block_until_ready(z)
    assert z.shape == (B, 32)

    # Correctness: check the pre-trunk conv features (where the intentional
    # bf16 quantization lives and tanh saturation cannot hide errors) as well
    # as the final output, both against an f32 XLA reference.
    z_ref, h_xla = reference_forward(enc, obs, return_features=True)
    h_k = enc.conv_features(obs).astype(jnp.float32)
    assert h_k.shape == h_xla.shape
    feat_err = float(jnp.max(jnp.abs(h_k - h_xla))
                     / (jnp.max(jnp.abs(h_xla)) + 1e-6))
    assert feat_err < 0.1, f"conv feature mismatch vs reference: {feat_err}"
    out_err = float(jnp.max(jnp.abs(z - z_ref)))
    assert out_err < 0.15, f"output mismatch vs reference: {out_err}"

    # Stochastic path (mu / log_std split + Normal sample).
    enc_s = EncoderPallas(obs_shape=(C, H, W), feature_dim=32,
                          stochastic=True, log_std_bounds=(-10.0, 2.0),
                          key=k_param)
    z_s = enc_s(obs, sample_key=k_sample)
    jax.block_until_ready(z_s)
    assert z_s.shape == (B, 32)
    assert bool(jnp.all(jnp.isfinite(z_s)))

    print("KERNEL_OK")
</pallas_src>

<mosaic_0001>
module attributes {stable_mosaic.version = 11 : i64} {
  func.func @_convstack_kernel(%arg0: i32, %arg1: memref<1x36x121xbf16, #tpu.memory_space<vmem>>, %arg2: memref<32x36xbf16, #tpu.memory_space<vmem>>, %arg3: memref<32x1xf32, #tpu.memory_space<vmem>>, %arg4: memref<32x288xbf16, #tpu.memory_space<vmem>>, %arg5: memref<32x1xf32, #tpu.memory_space<vmem>>, %arg6: memref<32x288xbf16, #tpu.memory_space<vmem>>, %arg7: memref<32x1xf32, #tpu.memory_space<vmem>>, %arg8: memref<32x288xbf16, #tpu.memory_space<vmem>>, %arg9: memref<32x1xf32, #tpu.memory_space<vmem>>, %arg10: memref<1x32x121xbf16, #tpu.memory_space<vmem>>, %arg11: memref<1x32x145xbf16, #tpu.memory_space<vmem>>, %arg12: memref<1x32x145xbf16, #tpu.memory_space<vmem>>, %arg13: memref<1x32x145xbf16, #tpu.memory_space<vmem>>) attributes {dimension_semantics = [#tpu.dimension_semantics<parallel>], iteration_bounds = array<i64: 2>, scalar_prefetch = 0 : i64, scratch_operands = 3 : i64, tpu.core_type = #tpu.core_type<tc>, window_params = [{transform_indices = @transform_0, window_bounds = array<i64: 1, 36, 121>}, {pipeline_mode = #tpu.pipeline_mode<synchronous>, transform_indices = @transform_1, window_bounds = array<i64: 32, 36>}, {pipeline_mode = #tpu.pipeline_mode<synchronous>, transform_indices = @transform_2, window_bounds = array<i64: 32, 1>}, {pipeline_mode = #tpu.pipeline_mode<synchronous>, transform_indices = @transform_3, window_bounds = array<i64: 32, 288>}, {pipeline_mode = #tpu.pipeline_mode<synchronous>, transform_indices = @transform_4, window_bounds = array<i64: 32, 1>}, {pipeline_mode = #tpu.pipeline_mode<synchronous>, transform_indices = @transform_5, window_bounds = array<i64: 32, 288>}, {pipeline_mode = #tpu.pipeline_mode<synchronous>, transform_indices = @transform_6, window_bounds = array<i64: 32, 1>}, {pipeline_mode = #tpu.pipeline_mode<synchronous>, transform_indices = @transform_7, window_bounds = array<i64: 32, 288>}, {pipeline_mode = #tpu.pipeline_mode<synchronous>, transform_indices = @transform_8, window_bounds = array<i64: 32, 1>}, {transform_indices = @transform_9, window_bounds = array<i64: 1, 32, 121>}]} {
    %cst = arith.constant 0.000000e+00 : bf16
    %0 = vector.broadcast %cst : bf16 to vector<1x32x24xbf16>
    %c0 = arith.constant 0 : index
    %c0_0 = arith.constant 0 : index
    %c121 = arith.constant 121 : index
    %1 = vector.load %arg11[%c0, %c0_0, %c121] : memref<1x32x145xbf16, #tpu.memory_space<vmem>>, vector<1x32x24xbf16>
    tpu.vector_store %arg11[%c0, %c0_0, %c121], %0 {strides = array<i32>} : memref<1x32x145xbf16, #tpu.memory_space<vmem>>, vector<1x32x24xbf16>,
    %c0_1 = arith.constant 0 : index
    %c0_2 = arith.constant 0 : index
    %c121_3 = arith.constant 121 : index
    %2 = vector.load %arg12[%c0_1, %c0_2, %c121_3] : memref<1x32x145xbf16, #tpu.memory_space<vmem>>, vector<1x32x24xbf16>
    tpu.vector_store %arg12[%c0_1, %c0_2, %c121_3], %0 {strides = array<i32>} : memref<1x32x145xbf16, #tpu.memory_space<vmem>>, vector<1x32x24xbf16>,
    %c0_4 = arith.constant 0 : index
    %c0_5 = arith.constant 0 : index
    %c121_6 = arith.constant 121 : index
    %3 = vector.load %arg13[%c0_4, %c0_5, %c121_6] : memref<1x32x145xbf16, #tpu.memory_space<vmem>>, vector<1x32x24xbf16>
    tpu.vector_store %arg13[%c0_4, %c0_5, %c121_6], %0 {strides = array<i32>} : memref<1x32x145xbf16, #tpu.memory_space<vmem>>, vector<1x32x24xbf16>,
    %c0_7 = arith.constant 0 : index
    %c0_8 = arith.constant 0 : index
    %c0_9 = arith.constant 0 : index
    %4 = vector.load %arg1[%c0_7, %c0_8, %c0_9] : memref<1x36x121xbf16, #tpu.memory_space<vmem>>, vector<1x36x121xbf16>
    %5 = vector.shape_cast %4 : vector<1x36x121xbf16> to vector<36x121xbf16>
    %c0_10 = arith.constant 0 : index
    %c0_11 = arith.constant 0 : index
    %6 = vector.load %arg2[%c0_10, %c0_11] : memref<32x36xbf16, #tpu.memory_space<vmem>>, vector<32x36xbf16>
    %cst_12 = arith.constant dense<0.000000e+00> : vector<32x121xf32>
    %7 = tpu.matmul %6, %5, %cst_12 {dimension_numbers = #tpu.dot_dimension_numbers<[1], [0], [0], [1], [0, 0, 1, 1], [], []>} : vector<32x36xbf16>, vector<36x121xbf16>, vector<32x121xf32> -> vector<32x121xf32>
    %c0_13 = arith.constant 0 : index
    %c0_14 = arith.constant 0 : index
    %8 = vector.load %arg3[%c0_13, %c0_14] : memref<32x1xf32, #tpu.memory_space<vmem>>, vector<32x1xf32>
    %9 = vector.broadcast %8 : vector<32x1xf32> to vector<32x121xf32>
    %10 = arith.addf %7, %9 : vector<32x121xf32>
    %cst_15 = arith.constant 0.000000e+00 : f32
    %11 = vector.broadcast %cst_15 : f32 to vector<32x121xf32>
    %12 = arith.maximumf %10, %11 : vector<32x121xf32>
    %13 = arith.truncf %12 : vector<32x121xf32> to vector<32x121xbf16>
    %c0_16 = arith.constant 0 : index
    %c0_17 = arith.constant 0 : index
    %c0_18 = arith.constant 0 : index
    %14 = vector.load %arg11[%c0_16, %c0_17, %c0_18] : memref<1x32x145xbf16, #tpu.memory_space<vmem>>, vector<1x32x121xbf16>
    %15 = vector.shape_cast %14 : vector<1x32x121xbf16> to vector<32x121xbf16>
    %16 = vector.shape_cast %13 : vector<32x121xbf16> to vector<1x32x121xbf16>
    tpu.vector_store %arg11[%c0_16, %c0_17, %c0_18], %16 {strides = array<i32>} : memref<1x32x145xbf16, #tpu.memory_space<vmem>>, vector<1x32x121xbf16>,
    %c0_19 = arith.constant 0 : index
    %c0_20 = arith.constant 0 : index
    %c0_21 = arith.constant 0 : index
    %17 = vector.load %arg11[%c0_19, %c0_20, %c0_21] : memref<1x32x145xbf16, #tpu.memory_space<vmem>>, vector<1x32x121xbf16>
    %18 = vector.shape_cast %17 : vector<1x32x121xbf16> to vector<32x121xbf16>
    %c0_22 = arith.constant 0 : index
    %c0_23 = arith.constant 0 : index
    %c1 = arith.constant 1 : index
    %19 = vector.load %arg11[%c0_22, %c0_23, %c1] : memref<1x32x145xbf16, #tpu.memory_space<vmem>>, vector<1x32x121xbf16>
    %20 = vector.shape_cast %19 : vector<1x32x121xbf16> to vector<32x121xbf16>
    %c0_24 = arith.constant 0 : index
    %c0_25 = arith.constant 0 : index
    %c2 = arith.constant 2 : index
    %21 = vector.load %arg11[%c0_24, %c0_25, %c2] : memref<1x32x145xbf16, #tpu.memory_space<vmem>>, vector<1x32x121xbf16>
    %22 = vector.shape_cast %21 : vector<1x32x121xbf16> to vector<32x121xbf16>
    %c0_26 = arith.constant 0 : index
    %c0_27 = arith.constant 0 : index
    %c11 = arith.constant 11 : index
    %23 = vector.load %arg11[%c0_26, %c0_27, %c11] : memref<1x32x145xbf16, #tpu.memory_space<vmem>>, vector<1x32x121xbf16>
    %24 = vector.shape_cast %23 : vector<1x32x121xbf16> to vector<32x121xbf16>
    %c0_28 = arith.constant 0 : index
    %c0_29 = arith.constant 0 : index
    %c12 = arith.constant 12 : index
    %25 = vector.load %arg11[%c0_28, %c0_29, %c12] : memref<1x32x145xbf16, #tpu.memory_space<vmem>>, vector<1x32x121xbf16>
    %26 = vector.shape_cast %25 : vector<1x32x121xbf16> to vector<32x121xbf16>
    %c0_30 = arith.constant 0 : index
    %c0_31 = arith.constant 0 : index
    %c13 = arith.constant 13 : index
    %27 = vector.load %arg11[%c0_30, %c0_31, %c13] : memref<1x32x145xbf16, #tpu.memory_space<vmem>>, vector<1x32x121xbf16>
    %28 = vector.shape_cast %27 : vector<1x32x121xbf16> to vector<32x121xbf16>
    %c0_32 = arith.constant 0 : index
    %c0_33 = arith.constant 0 : index
    %c22 = arith.constant 22 : index
    %29 = vector.load %arg11[%c0_32, %c0_33, %c22] : memref<1x32x145xbf16, #tpu.memory_space<vmem>>, vector<1x32x121xbf16>
    %30 = vector.shape_cast %29 : vector<1x32x121xbf16> to vector<32x121xbf16>
    %c0_34 = arith.constant 0 : index
    %c0_35 = arith.constant 0 : index
    %c23 = arith.constant 23 : index
    %31 = vector.load %arg11[%c0_34, %c0_35, %c23] : memref<1x32x145xbf16, #tpu.memory_space<vmem>>, vector<1x32x121xbf16>
    %32 = vector.shape_cast %31 : vector<1x32x121xbf16> to vector<32x121xbf16>
    %c0_36 = arith.constant 0 : index
    %c0_37 = arith.constant 0 : index
    %c24 = arith.constant 24 : index
    %33 = vector.load %arg11[%c0_36, %c0_37, %c24] : memref<1x32x145xbf16, #tpu.memory_space<vmem>>, vector<1x32x121xbf16>
    %34 = vector.shape_cast %33 : vector<1x32x121xbf16> to vector<32x121xbf16>
    %35 = tpu.concatenate %18, %20, %22, %24, %26, %28, %30, %32, %34 in 0 : vector<32x121xbf16>, vector<32x121xbf16>, vector<32x121xbf16>, vector<32x121xbf16>, vector<32x121xbf16>, vector<32x121xbf16>, vector<32x121xbf16>, vector<32x121xbf16>, vector<32x121xbf16> -> vector<288x121xbf16>
    %c0_38 = arith.constant 0 : index
    %c0_39 = arith.constant 0 : index
    %36 = vector.load %arg4[%c0_38, %c0_39] : memref<32x288xbf16, #tpu.memory_space<vmem>>, vector<32x288xbf16>
    %cst_40 = arith.constant dense<0.000000e+00> : vector<32x121xf32>
    %37 = tpu.matmul %36, %35, %cst_40 {dimension_numbers = #tpu.dot_dimension_numbers<[1], [0], [0], [1], [0, 0, 1, 1], [], []>} : vector<32x288xbf16>, vector<288x121xbf16>, vector<32x121xf32> -> vector<32x121xf32>
    %c0_41 = arith.constant 0 : index
    %c0_42 = arith.constant 0 : index
    %38 = vector.load %arg5[%c0_41, %c0_42] : memref<32x1xf32, #tpu.memory_space<vmem>>, vector<32x1xf32>
    %39 = vector.broadcast %38 : vector<32x1xf32> to vector<32x121xf32>
    %40 = arith.addf %37, %39 : vector<32x121xf32>
    %cst_43 = arith.constant 0.000000e+00 : f32
    %41 = vector.broadcast %cst_43 : f32 to vector<32x121xf32>
    %42 = arith.maximumf %40, %41 : vector<32x121xf32>
    %43 = arith.truncf %42 : vector<32x121xf32> to vector<32x121xbf16>
    %c0_44 = arith.constant 0 : index
    %c0_45 = arith.constant 0 : index
    %c0_46 = arith.constant 0 : index
    %44 = vector.load %arg12[%c0_44, %c0_45, %c0_46] : memref<1x32x145xbf16, #tpu.memory_space<vmem>>, vector<1x32x121xbf16>
    %45 = vector.shape_cast %44 : vector<1x32x121xbf16> to vector<32x121xbf16>
    %46 = vector.shape_cast %43 : vector<32x121xbf16> to vector<1x32x121xbf16>
    tpu.vector_store %arg12[%c0_44, %c0_45, %c0_46], %46 {strides = array<i32>} : memref<1x32x145xbf16, #tpu.memory_space<vmem>>, vector<1x32x121xbf16>,
    %c0_47 = arith.constant 0 : index
    %c0_48 = arith.constant 0 : index
    %c0_49 = arith.constant 0 : index
    %47 = vector.load %arg12[%c0_47, %c0_48, %c0_49] : memref<1x32x145xbf16, #tpu.memory_space<vmem>>, vector<1x32x121xbf16>
    %48 = vector.shape_cast %47 : vector<1x32x121xbf16> to vector<32x121xbf16>
    %c0_50 = arith.constant 0 : index
    %c0_51 = arith.constant 0 : index
    %c1_52 = arith.constant 1 : index
    %49 = vector.load %arg12[%c0_50, %c0_51, %c1_52] : memref<1x32x145xbf16, #tpu.memory_space<vmem>>, vector<1x32x121xbf16>
    %50 = vector.shape_cast %49 : vector<1x32x121xbf16> to vector<32x121xbf16>
    %c0_53 = arith.constant 0 : index
    %c0_54 = arith.constant 0 : index
    %c2_55 = arith.constant 2 : index
    %51 = vector.load %arg12[%c0_53, %c0_54, %c2_55] : memref<1x32x145xbf16, #tpu.memory_space<vmem>>, vector<1x32x121xbf16>
    %52 = vector.shape_cast %51 : vector<1x32x121xbf16> to vector<32x121xbf16>
    %c0_56 = arith.constant 0 : index
    %c0_57 = arith.constant 0 : index
    %c11_58 = arith.constant 11 : index
    %53 = vector.load %arg12[%c0_56, %c0_57, %c11_58] : memref<1x32x145xbf16, #tpu.memory_space<vmem>>, vector<1x32x121xbf16>
    %54 = vector.shape_cast %53 : vector<1x32x121xbf16> to vector<32x121xbf16>
    %c0_59 = arith.constant 0 : index
    %c0_60 = arith.constant 0 : index
    %c12_61 = arith.constant 12 : index
    %55 = vector.load %arg12[%c0_59, %c0_60, %c12_61] : memref<1x32x145xbf16, #tpu.memory_space<vmem>>, vector<1x32x121xbf16>
    %56 = vector.shape_cast %55 : vector<1x32x121xbf16> to vector<32x121xbf16>
    %c0_62 = arith.constant 0 : index
    %c0_63 = arith.constant 0 : index
    %c13_64 = arith.constant 13 : index
    %57 = vector.load %arg12[%c0_62, %c0_63, %c13_64] : memref<1x32x145xbf16, #tpu.memory_space<vmem>>, vector<1x32x121xbf16>
    %58 = vector.shape_cast %57 : vector<1x32x121xbf16> to vector<32x121xbf16>
    %c0_65 = arith.constant 0 : index
    %c0_66 = arith.constant 0 : index
    %c22_67 = arith.constant 22 : index
    %59 = vector.load %arg12[%c0_65, %c0_66, %c22_67] : memref<1x32x145xbf16, #tpu.memory_space<vmem>>, vector<1x32x121xbf16>
    %60 = vector.shape_cast %59 : vector<1x32x121xbf16> to vector<32x121xbf16>
    %c0_68 = arith.constant 0 : index
    %c0_69 = arith.constant 0 : index
    %c23_70 = arith.constant 23 : index
    %61 = vector.load %arg12[%c0_68, %c0_69, %c23_70] : memref<1x32x145xbf16, #tpu.memory_space<vmem>>, vector<1x32x121xbf16>
    %62 = vector.shape_cast %61 : vector<1x32x121xbf16> to vector<32x121xbf16>
    %c0_71 = arith.constant 0 : index
    %c0_72 = arith.constant 0 : index
    %c24_73 = arith.constant 24 : index
    %63 = vector.load %arg12[%c0_71, %c0_72, %c24_73] : memref<1x32x145xbf16, #tpu.memory_space<vmem>>, vector<1x32x121xbf16>
    %64 = vector.shape_cast %63 : vector<1x32x121xbf16> to vector<32x121xbf16>
    %65 = tpu.concatenate %48, %50, %52, %54, %56, %58, %60, %62, %64 in 0 : vector<32x121xbf16>, vector<32x121xbf16>, vector<32x121xbf16>, vector<32x121xbf16>, vector<32x121xbf16>, vector<32x121xbf16>, vector<32x121xbf16>, vector<32x121xbf16>, vector<32x121xbf16> -> vector<288x121xbf16>
    %c0_74 = arith.constant 0 : index
    %c0_75 = arith.constant 0 : index
    %66 = vector.load %arg6[%c0_74, %c0_75] : memref<32x288xbf16, #tpu.memory_space<vmem>>, vector<32x288xbf16>
    %cst_76 = arith.constant dense<0.000000e+00> : vector<32x121xf32>
    %67 = tpu.matmul %66, %65, %cst_76 {dimension_numbers = #tpu.dot_dimension_numbers<[1], [0], [0], [1], [0, 0, 1, 1], [], []>} : vector<32x288xbf16>, vector<288x121xbf16>, vector<32x121xf32> -> vector<32x121xf32>
    %c0_77 = arith.constant 0 : index
    %c0_78 = arith.constant 0 : index
    %68 = vector.load %arg7[%c0_77, %c0_78] : memref<32x1xf32, #tpu.memory_space<vmem>>, vector<32x1xf32>
    %69 = vector.broadcast %68 : vector<32x1xf32> to vector<32x121xf32>
    %70 = arith.addf %67, %69 : vector<32x121xf32>
    %cst_79 = arith.constant 0.000000e+00 : f32
    %71 = vector.broadcast %cst_79 : f32 to vector<32x121xf32>
    %72 = arith.maximumf %70, %71 : vector<32x121xf32>
    %73 = arith.truncf %72 : vector<32x121xf32> to vector<32x121xbf16>
    %c0_80 = arith.constant 0 : index
    %c0_81 = arith.constant 0 : index
    %c0_82 = arith.constant 0 : index
    %74 = vector.load %arg13[%c0_80, %c0_81, %c0_82] : memref<1x32x145xbf16, #tpu.memory_space<vmem>>, vector<1x32x121xbf16>
    %75 = vector.shape_cast %74 : vector<1x32x121xbf16> to vector<32x121xbf16>
    %76 = vector.shape_cast %73 : vector<32x121xbf16> to vector<1x32x121xbf16>
    tpu.vector_store %arg13[%c0_80, %c0_81, %c0_82], %76 {strides = array<i32>} : memref<1x32x145xbf16, #tpu.memory_space<vmem>>, vector<1x32x121xbf16>,
    %c0_83 = arith.constant 0 : index
    %c0_84 = arith.constant 0 : index
    %c0_85 = arith.constant 0 : index
    %77 = vector.load %arg13[%c0_83, %c0_84, %c0_85] : memref<1x32x145xbf16, #tpu.memory_space<vmem>>, vector<1x32x121xbf16>
    %78 = vector.shape_cast %77 : vector<1x32x121xbf16> to vector<32x121xbf16>
    %c0_86 = arith.constant 0 : index
    %c0_87 = arith.constant 0 : index
    %c1_88 = arith.constant 1 : index
    %79 = vector.load %arg13[%c0_86, %c0_87, %c1_88] : memref<1x32x145xbf16, #tpu.memory_space<vmem>>, vector<1x32x121xbf16>
    %80 = vector.shape_cast %79 : vector<1x32x121xbf16> to vector<32x121xbf16>
    %c0_89 = arith.constant 0 : index
    %c0_90 = arith.constant 0 : index
    %c2_91 = arith.constant 2 : index
    %81 = vector.load %arg13[%c0_89, %c0_90, %c2_91] : memref<1x32x145xbf16, #tpu.memory_space<vmem>>, vector<1x32x121xbf16>
    %82 = vector.shape_cast %81 : vector<1x32x121xbf16> to vector<32x121xbf16>
    %c0_92 = arith.constant 0 : index
    %c0_93 = arith.constant 0 : index
    %c11_94 = arith.constant 11 : index
    %83 = vector.load %arg13[%c0_92, %c0_93, %c11_94] : memref<1x32x145xbf16, #tpu.memory_space<vmem>>, vector<1x32x121xbf16>
    %84 = vector.shape_cast %83 : vector<1x32x121xbf16> to vector<32x121xbf16>
    %c0_95 = arith.constant 0 : index
    %c0_96 = arith.constant 0 : index
    %c12_97 = arith.constant 12 : index
    %85 = vector.load %arg13[%c0_95, %c0_96, %c12_97] : memref<1x32x145xbf16, #tpu.memory_space<vmem>>, vector<1x32x121xbf16>
    %86 = vector.shape_cast %85 : vector<1x32x121xbf16> to vector<32x121xbf16>
    %c0_98 = arith.constant 0 : index
    %c0_99 = arith.constant 0 : index
    %c13_100 = arith.constant 13 : index
    %87 = vector.load %arg13[%c0_98, %c0_99, %c13_100] : memref<1x32x145xbf16, #tpu.memory_space<vmem>>, vector<1x32x121xbf16>
    %88 = vector.shape_cast %87 : vector<1x32x121xbf16> to vector<32x121xbf16>
    %c0_101 = arith.constant 0 : index
    %c0_102 = arith.constant 0 : index
    %c22_103 = arith.constant 22 : index
    %89 = vector.load %arg13[%c0_101, %c0_102, %c22_103] : memref<1x32x145xbf16, #tpu.memory_space<vmem>>, vector<1x32x121xbf16>
    %90 = vector.shape_cast %89 : vector<1x32x121xbf16> to vector<32x121xbf16>
    %c0_104 = arith.constant 0 : index
    %c0_105 = arith.constant 0 : index
    %c23_106 = arith.constant 23 : index
    %91 = vector.load %arg13[%c0_104, %c0_105, %c23_106] : memref<1x32x145xbf16, #tpu.memory_space<vmem>>, vector<1x32x121xbf16>
    %92 = vector.shape_cast %91 : vector<1x32x121xbf16> to vector<32x121xbf16>
    %c0_107 = arith.constant 0 : index
    %c0_108 = arith.constant 0 : index
    %c24_109 = arith.constant 24 : index
    %93 = vector.load %arg13[%c0_107, %c0_108, %c24_109] : memref<1x32x145xbf16, #tpu.memory_space<vmem>>, vector<1x32x121xbf16>
    %94 = vector.shape_cast %93 : vector<1x32x121xbf16> to vector<32x121xbf16>
    %95 = tpu.concatenate %78, %80, %82, %84, %86, %88, %90, %92, %94 in 0 : vector<32x121xbf16>, vector<32x121xbf16>, vector<32x121xbf16>, vector<32x121xbf16>, vector<32x121xbf16>, vector<32x121xbf16>, vector<32x121xbf16>, vector<32x121xbf16>, vector<32x121xbf16> -> vector<288x121xbf16>
    %c0_110 = arith.constant 0 : index
    %c0_111 = arith.constant 0 : index
    %96 = vector.load %arg8[%c0_110, %c0_111] : memref<32x288xbf16, #tpu.memory_space<vmem>>, vector<32x288xbf16>
    %cst_112 = arith.constant dense<0.000000e+00> : vector<32x121xf32>
    %97 = tpu.matmul %96, %95, %cst_112 {dimension_numbers = #tpu.dot_dimension_numbers<[1], [0], [0], [1], [0, 0, 1, 1], [], []>} : vector<32x288xbf16>, vector<288x121xbf16>, vector<32x121xf32> -> vector<32x121xf32>
    %c0_113 = arith.constant 0 : index
    %c0_114 = arith.constant 0 : index
    %98 = vector.load %arg9[%c0_113, %c0_114] : memref<32x1xf32, #tpu.memory_space<vmem>>, vector<32x1xf32>
    %99 = vector.broadcast %98 : vector<32x1xf32> to vector<32x121xf32>
    %100 = arith.addf %97, %99 : vector<32x121xf32>
    %cst_115 = arith.constant 0.000000e+00 : f32
    %101 = vector.broadcast %cst_115 : f32 to vector<32x121xf32>
    %102 = arith.maximumf %100, %101 : vector<32x121xf32>
    %103 = arith.truncf %102 : vector<32x121xf32> to vector<32x121xbf16>
    %c0_116 = arith.constant 0 : index
    %c0_117 = arith.constant 0 : index
    %c0_118 = arith.constant 0 : index
    %104 = vector.load %arg10[%c0_116, %c0_117, %c0_118] : memref<1x32x121xbf16, #tpu.memory_space<vmem>>, vector<1x32x121xbf16>
    %105 = vector.shape_cast %104 : vector<1x32x121xbf16> to vector<32x121xbf16>
    %106 = vector.shape_cast %103 : vector<32x121xbf16> to vector<1x32x121xbf16>
    tpu.vector_store %arg10[%c0_116, %c0_117, %c0_118], %106 {strides = array<i32>} : memref<1x32x121xbf16, #tpu.memory_space<vmem>>, vector<1x32x121xbf16>,
    return
  }
  func.func @transform_0(%arg0: i32) -> (i32, i32, i32) {
    %c0_i32 = arith.constant 0 : i32
    %c0_i32_0 = arith.constant 0 : i32
    %c0_i32_1 = arith.constant 0 : i32
    return %arg0, %c0_i32, %c0_i32_0 : i32, i32, i32
  }
  func.func @transform_1(%arg0: i32) -> (i32, i32) {
    %c0_i32 = arith.constant 0 : i32
    %c0_i32_0 = arith.constant 0 : i32
    %c0_i32_1 = arith.constant 0 : i32
    return %c0_i32, %c0_i32_0 : i32, i32
  }
  func.func @transform_2(%arg0: i32) -> (i32, i32) {
    %c0_i32 = arith.constant 0 : i32
    %c0_i32_0 = arith.constant 0 : i32
    %c0_i32_1 = arith.constant 0 : i32
    return %c0_i32, %c0_i32_0 : i32, i32
  }
  func.func @transform_3(%arg0: i32) -> (i32, i32) {
    %c0_i32 = arith.constant 0 : i32
    %c0_i32_0 = arith.constant 0 : i32
    %c0_i32_1 = arith.constant 0 : i32
    return %c0_i32, %c0_i32_0 : i32, i32
  }
  func.func @transform_4(%arg0: i32) -> (i32, i32) {
    %c0_i32 = arith.constant 0 : i32
    %c0_i32_0 = arith.constant 0 : i32
    %c0_i32_1 = arith.constant 0 : i32
    return %c0_i32, %c0_i32_0 : i32, i32
  }
  func.func @transform_5(%arg0: i32) -> (i32, i32) {
    %c0_i32 = arith.constant 0 : i32
    %c0_i32_0 = arith.constant 0 : i32
    %c0_i32_1 = arith.constant 0 : i32
    return %c0_i32, %c0_i32_0 : i32, i32
  }
  func.func @transform_6(%arg0: i32) -> (i32, i32) {
    %c0_i32 = arith.constant 0 : i32
    %c0_i32_0 = arith.constant 0 : i32
    %c0_i32_1 = arith.constant 0 : i32
    return %c0_i32, %c0_i32_0 : i32, i32
  }
  func.func @transform_7(%arg0: i32) -> (i32, i32) {
    %c0_i32 = arith.constant 0 : i32
    %c0_i32_0 = arith.constant 0 : i32
    %c0_i32_1 = arith.constant 0 : i32
    return %c0_i32, %c0_i32_0 : i32, i32
  }
  func.func @transform_8(%arg0: i32) -> (i32, i32) {
    %c0_i32 = arith.constant 0 : i32
    %c0_i32_0 = arith.constant 0 : i32
    %c0_i32_1 = arith.constant 0 : i32
    return %c0_i32, %c0_i32_0 : i32, i32
  }
  func.func @transform_9(%arg0: i32) -> (i32, i32, i32) {
    %c0_i32 = arith.constant 0 : i32
    %c0_i32_0 = arith.constant 0 : i32
    %c0_i32_1 = arith.constant 0 : i32
    return %arg0, %c0_i32, %c0_i32_0 : i32, i32, i32
  }
}

</mosaic_0001>

<llo_original>
// kernel: tpu_custom_call.1
$region0: #{tpu_custom_call.1}
  #allocation0 [shape = 'u32[]', space=smem, size = 0x4, offset = 0x4, fixed_abs, tag = 'smem constant byte address 0x4 - core index']
  #allocation1 [shape = 'u32[144,128]{1,0:T(1,128)}', space=vmem, size = 0x12000, scoped, tag = 'internal scratch']
  #allocation2 [shape = 'bf16[1,32,145]{2,1,0:T(16,128)(2,1)}', space=vmem, size = 0x4000, scoped, tag = 'scratch operand']
  #allocation3 [shape = 'bf16[1,32,145]{2,1,0:T(16,128)(2,1)}', space=vmem, size = 0x4000, scoped, tag = 'scratch operand']
  #allocation4 [shape = 'bf16[1,32,145]{2,1,0:T(16,128)(2,1)}', space=vmem, size = 0x4000, scoped, tag = 'scratch operand']
  %s0 = inlined_call_operand.vmem [shape: bf16[2,36,121], index: 0, kind: input, shape index: {}]
  %s1 = inlined_call_operand.vmem [shape: bf16[32,36], index: 1, kind: input, shape index: {}]
  %s2 = inlined_call_operand.vmem [shape: f32[32,1], index: 2, kind: input, shape index: {}]
  %s3 = inlined_call_operand.vmem [shape: bf16[32,288], index: 3, kind: input, shape index: {}]
  %s4 = inlined_call_operand.vmem [shape: f32[32,1], index: 4, kind: input, shape index: {}]
  %s5 = inlined_call_operand.vmem [shape: bf16[32,288], index: 5, kind: input, shape index: {}]
  %s6 = inlined_call_operand.vmem [shape: f32[32,1], index: 6, kind: input, shape index: {}]
  %s7 = inlined_call_operand.vmem [shape: bf16[32,288], index: 7, kind: input, shape index: {}]
  %s8 = inlined_call_operand.vmem [shape: f32[32,1], index: 8, kind: input, shape index: {}]
  %s9 = inlined_call_operand.hbm [shape: bf16[2,32,121], index: 9, kind: output, shape index: {}]
  %s10 = sld [smem:[#allocation0]]
  $region69: #{tpu_custom_call.1} parent=0
    _
  %s12 = ssub.s32 1, %s10
  %s13 = scalar_select 0, %s12, %s10
  $region1: #{tpu_custom_call.1} parent=0
    #allocation5 [shape = 'u8[16384]{0}', space=vmem, size = 0x4000, scoped, tag = 'output window, operand 0']
    #allocation6 [shape = 's32[2]{0}', space=sflag, size = 0x8, scoped, tag = 'scoped memory for tpu_custom_call.1']
    %14 = vsyncpa [#allocation6], 0
    %s15 = scalar_lea.sflag [#allocation6], 1
    %16 = vsyncpa %s15, 0
    loop: start=0, step=1, limit=4
    $region2: #{tpu_custom_call.1} parent=1 // loop_pre_header
      _
    $region3: #{tpu_custom_call.1} parent=1 // loop_header
      %s18 = sphi 0, %s22
      %p19 = scmp.ge.s32.totalorder %s18, 4
      %s28 = sphi 0, %s30
      %s31 = sphi 0, %s28
      %s32 = sphi 0, %s31
      %s48 = sphi 0, %s32
      %s52 = sphi 0, %s52
      %s54 = sphi 0, %s52
      %s55 = sphi 0, %s54
      %s69 = sphi 0, %s55
      %s73 = sphi 0, %s73
      %s75 = sphi 0, %s73
      %s76 = sphi 0, %s75
      %s90 = sphi 0, %s76
      %s94 = sphi 0, %s94
      %s96 = sphi 0, %s94
      %s97 = sphi 0, %s96
      %s111 = sphi 0, %s97
      %s115 = sphi 0, %s115
      %s117 = sphi 0, %s115
      %s118 = sphi 0, %s117
      %s132 = sphi 0, %s118
      %s136 = sphi 0, %s136
      %s138 = sphi 0, %s136
      %s139 = sphi 0, %s138
      %s153 = sphi 0, %s139
      %s157 = sphi 0, %s157
      %s159 = sphi 0, %s157
      %s160 = sphi 0, %s159
      %s174 = sphi 0, %s160
      %s178 = sphi 0, %s178
      %s180 = sphi 0, %s178
      %s181 = sphi 0, %s180
      %s195 = sphi 0, %s181
      %s199 = sphi 0, %s199
      %s201 = sphi 0, %s199
      %s202 = sphi 0, %s201
      %s216 = sphi 0, %s202
      %s222 = sphi 0, %s224
      %s225 = sphi 0, %s222
      %s226 = sphi 0, %s225
      %s242 = sphi 0, %s226
    $region4: #{tpu_custom_call.1} parent=1 // loop_header_branch
      %21 = sbr.rel (%p19) target = $region8
    $region5: #{tpu_custom_call.1} parent=1 // loop_body
      %s23 = ssub.s32 %s18, 1
      %s24 = ssub.s32 %s18, 2
      %s25 = sadd.s32 %s18, 1
      %s26 = ssub.s32 %s18, %s25
      %p27 = scmp.eq.s32.totalorder %s26, 0
      %s29 = sadd.s32 %s28, 1
      %s30 = scalar_select %p27, %s28, %s29
      %p33 = pneg %p27
      %p34 = scmp.eq.s32.totalorder %s18, 1
      %p35 = por %p33, %p34
      %p36 = scmp.ne.s32.totalorder %s28, %s31
      %p37 = scmp.eq.s32.totalorder %s18, 0
      %p38 = por %p36, %p37
      %p39 = scmp.ne.s32.totalorder %s28, %s31
      %p40 = scmp.eq.s32.totalorder %s23, 1
      %p41 = por %p39, %p40
      %p42 = scmp.ne.s32.totalorder %s31, %s32
      %p43 = scmp.eq.s32.totalorder %s23, 0
      %p44 = por %p42, %p43
      %p45 = scmp.ne.s32.totalorder %s31, %s32
      %p46 = scmp.eq.s32.totalorder %s24, 1
      %p47 = por %p45, %p46
      %p49 = scmp.ne.s32.totalorder %s32, %s48
      %p50 = scmp.eq.s32.totalorder %s24, 0
      %p51 = por %p49, %p50
      %s53 = sadd.s32 %s52, 1
      %p56 = scmp.eq.s32.totalorder %s18, 1
      %p57 = scmp.ne.s32.totalorder %s52, %s54
      %p58 = scmp.eq.s32.totalorder %s18, 0
      %p59 = por %p57, %p58
      %p60 = scmp.ne.s32.totalorder %s52, %s54
      %p61 = scmp.eq.s32.totalorder %s23, 1
      %p62 = por %p60, %p61
      %p63 = scmp.ne.s32.totalorder %s54, %s55
      %p64 = scmp.eq.s32.totalorder %s23, 0
      %p65 = por %p63, %p64
      %p66 = scmp.ne.s32.totalorder %s54, %s55
      %p67 = scmp.eq.s32.totalorder %s24, 1
      %p68 = por %p66, %p67
      %p70 = scmp.ne.s32.totalorder %s55, %s69
      %p71 = scmp.eq.s32.totalorder %s24, 0
      %p72 = por %p70, %p71
      %s74 = sadd.s32 %s73, 1
      %p77 = scmp.eq.s32.totalorder %s18, 1
      %p78 = scmp.ne.s32.totalorder %s73, %s75
      %p79 = scmp.eq.s32.totalorder %s18, 0
      %p80 = por %p78, %p79
      %p81 = scmp.ne.s32.totalorder %s73, %s75
      %p82 = scmp.eq.s32.totalorder %s23, 1
      %p83 = por %p81, %p82
      %p84 = scmp.ne.s32.totalorder %s75, %s76
      %p85 = scmp.eq.s32.totalorder %s23, 0
      %p86 = por %p84, %p85
      %p87 = scmp.ne.s32.totalorder %s75, %s76
      %p88 = scmp.eq.s32.totalorder %s24, 1
      %p89 = por %p87, %p88
      %p91 = scmp.ne.s32.totalorder %s76, %s90
      %p92 = scmp.eq.s32.totalorder %s24, 0
      %p93 = por %p91, %p92
      %s95 = sadd.s32 %s94, 1
      %p98 = scmp.eq.s32.totalorder %s18, 1
      %p99 = scmp.ne.s32.totalorder %s94, %s96
      %p100 = scmp.eq.s32.totalorder %s18, 0
      %p101 = por %p99, %p100
      %p102 = scmp.ne.s32.totalorder %s94, %s96
      %p103 = scmp.eq.s32.totalorder %s23, 1
      %p104 = por %p102, %p103
      %p105 = scmp.ne.s32.totalorder %s96, %s97
      %p106 = scmp.eq.s32.totalorder %s23, 0
      %p107 = por %p105, %p106
      %p108 = scmp.ne.s32.totalorder %s96, %s97
      %p109 = scmp.eq.s32.totalorder %s24, 1
      %p110 = por %p108, %p109
      %p112 = scmp.ne.s32.totalorder %s97, %s111
      %p113 = scmp.eq.s32.totalorder %s24, 0
      %p114 = por %p112, %p113
      %s116 = sadd.s32 %s115, 1
      %p119 = scmp.eq.s32.totalorder %s18, 1
      %p120 = scmp.ne.s32.totalorder %s115, %s117
      %p121 = scmp.eq.s32.totalorder %s18, 0
      %p122 = por %p120, %p121
      %p123 = scmp.ne.s32.totalorder %s115, %s117
      %p124 = scmp.eq.s32.totalorder %s23, 1
      %p125 = por %p123, %p124
      %p126 = scmp.ne.s32.totalorder %s117, %s118
      %p127 = scmp.eq.s32.totalorder %s23, 0
      %p128 = por %p126, %p127
      %p129 = scmp.ne.s32.totalorder %s117, %s118
      %p130 = scmp.eq.s32.totalorder %s24, 1
      %p131 = por %p129, %p130
      %p133 = scmp.ne.s32.totalorder %s118, %s132
      %p134 = scmp.eq.s32.totalorder %s24, 0
      %p135 = por %p133, %p134
      %s137 = sadd.s32 %s136, 1
      %p140 = scmp.eq.s32.totalorder %s18, 1
      %p141 = scmp.ne.s32.totalorder %s136, %s138
      %p142 = scmp.eq.s32.totalorder %s18, 0
      %p143 = por %p141, %p142
      %p144 = scmp.ne.s32.totalorder %s136, %s138
      %p145 = scmp.eq.s32.totalorder %s23, 1
      %p146 = por %p144, %p145
      %p147 = scmp.ne.s32.totalorder %s138, %s139
      %p148 = scmp.eq.s32.totalorder %s23, 0
      %p149 = por %p147, %p148
      %p150 = scmp.ne.s32.totalorder %s138, %s139
      %p151 = scmp.eq.s32.totalorder %s24, 1
      %p152 = por %p150, %p151
      %p154 = scmp.ne.s32.totalorder %s139, %s153
      %p155 = scmp.eq.s32.totalorder %s24, 0
      %p156 = por %p154, %p155
      %s158 = sadd.s32 %s157, 1
      %p161 = scmp.eq.s32.totalorder %s18, 1
      %p162 = scmp.ne.s32.totalorder %s157, %s159
      %p163 = scmp.eq.s32.totalorder %s18, 0
      %p164 = por %p162, %p163
      %p165 = scmp.ne.s32.totalorder %s157, %s159
      %p166 = scmp.eq.s32.totalorder %s23, 1
      %p167 = por %p165, %p166
      %p168 = scmp.ne.s32.totalorder %s159, %s160
      %p169 = scmp.eq.s32.totalorder %s23, 0
      %p170 = por %p168, %p169
      %p171 = scmp.ne.s32.totalorder %s159, %s160
      %p172 = scmp.eq.s32.totalorder %s24, 1
      %p173 = por %p171, %p172
      %p175 = scmp.ne.s32.totalorder %s160, %s174
      %p176 = scmp.eq.s32.totalorder %s24, 0
      %p177 = por %p175, %p176
      %s179 = sadd.s32 %s178, 1
      %p182 = scmp.eq.s32.totalorder %s18, 1
      %p183 = scmp.ne.s32.totalorder %s178, %s180
      %p184 = scmp.eq.s32.totalorder %s18, 0
      %p185 = por %p183, %p184
      %p186 = scmp.ne.s32.totalorder %s178, %s180
      %p187 = scmp.eq.s32.totalorder %s23, 1
      %p188 = por %p186, %p187
      %p189 = scmp.ne.s32.totalorder %s180, %s181
      %p190 = scmp.eq.s32.totalorder %s23, 0
      %p191 = por %p189, %p190
      %p192 = scmp.ne.s32.totalorder %s180, %s181
      %p193 = scmp.eq.s32.totalorder %s24, 1
      %p194 = por %p192, %p193
      %p196 = scmp.ne.s32.totalorder %s181, %s195
      %p197 = scmp.eq.s32.totalorder %s24, 0
      %p198 = por %p196, %p197
      %s200 = sadd.s32 %s199, 1
      %p203 = scmp.eq.s32.totalorder %s18, 1
      %p204 = scmp.ne.s32.totalorder %s199, %s201
      %p205 = scmp.eq.s32.totalorder %s18, 0
      %p206 = por %p204, %p205
      %p207 = scmp.ne.s32.totalorder %s199, %s201
      %p208 = scmp.eq.s32.totalorder %s23, 1
      %p209 = por %p207, %p208
      %p210 = scmp.ne.s32.totalorder %s201, %s202
      %p211 = scmp.eq.s32.totalorder %s23, 0
      %p212 = por %p210, %p211
      %p213 = scmp.ne.s32.totalorder %s201, %s202
      %p214 = scmp.eq.s32.totalorder %s24, 1
      %p215 = por %p213, %p214
      %p217 = scmp.ne.s32.totalorder %s202, %s216
      %p218 = scmp.eq.s32.totalorder %s24, 0
      %p219 = por %p217, %p218
      %s220 = ssub.s32 %s18, %s25
      %p221 = scmp.eq.s32.totalorder %s220, 0
      %s223 = sadd.s32 %s222, 1
      %s224 = scalar_select %p221, %s222, %s223
      %p227 = pneg %p221
      %p228 = scmp.eq.s32.totalorder %s18, 1
      %p229 = por %p227, %p228
      %p230 = scmp.ne.s32.totalorder %s222, %s225
      %p231 = scmp.eq.s32.totalorder %s18, 0
      %p232 = por %p230, %p231
      %p233 = scmp.ne.s32.totalorder %s222, %s225
      %p234 = scmp.eq.s32.totalorder %s23, 1
      %p235 = por %p233, %p234
      %p236 = scmp.ne.s32.totalorder %s225, %s226
      %p237 = scmp.eq.s32.totalorder %s23, 0
      %p238 = por %p236, %p237
      %p239 = scmp.ne.s32.totalorder %s225, %s226
      %p240 = scmp.eq.s32.totalorder %s24, 1
      %p241 = por %p239, %p240
      %p243 = scmp.ne.s32.totalorder %s226, %s242
      %p244 = scmp.eq.s32.totalorder %s24, 0
      %p245 = por %p243, %p244
      %p246 = scmp.le.s32.totalorder 1, %s18
      %p247 = scmp.lt.s32.totalorder %s18, 3
      %p248 = pnand %p246, %p247
      %p249 = pneg %p248
      // Predicated region
      $region9: #{tpu_custom_call.1} parent=5 // pred_check
        _
      $region10: #{tpu_custom_call.1} parent=5 // pred_check_branch
        %251 = sbr.rel (%p248) target = $region12
      $region11: #{tpu_custom_call.1} parent=5 // pred_region
        %s252 = ssub.s32 %s18, 1
        // Predicated region
        $region13: #{tpu_custom_call.1} parent=11 // pred_check
          %p253 = pneg %p65
        $region14: #{tpu_custom_call.1} parent=11 // pred_check_branch
          %255 = sbr.rel (%p253) target = $region16
        $region15: #{tpu_custom_call.1} parent=11 // pred_region
          _
        $region16: #{tpu_custom_call.1} parent=11 // pred_fallthru
          _
        // Predicated region
        $region17: #{tpu_custom_call.1} parent=11 // pred_check
          %p256 = pneg %p86
        $region18: #{tpu_custom_call.1} parent=11 // pred_check_branch
          %258 = sbr.rel (%p256) target = $region20
        $region19: #{tpu_custom_call.1} parent=11 // pred_region
          _
        $region20: #{tpu_custom_call.1} parent=11 // pred_fallthru
          _
        // Predicated region
        $region21: #{tpu_custom_call.1} parent=11 // pred_check
          %p259 = pneg %p107
        $region22: #{tpu_custom_call.1} parent=11 // pred_check_branch
          %261 = sbr.rel (%p259) target = $region24
        $region23: #{tpu_custom_call.1} parent=11 // pred_region
          _
        $region24: #{tpu_custom_call.1} parent=11 // pred_fallthru
          _
        // Predicated region
        $region25: #{tpu_custom_call.1} parent=11 // pred_check
          %p262 = pneg %p128
        $region26: #{tpu_custom_call.1} parent=11 // pred_check_branch
          %264 = sbr.rel (%p262) target = $region28
        $region27: #{tpu_custom_call.1} parent=11 // pred_region
          _
        $region28: #{tpu_custom_call.1} parent=11 // pred_fallthru
          _
        // Predicated region
        $region29: #{tpu_custom_call.1} parent=11 // pred_check
          %p265 = pneg %p149
        $region30: #{tpu_custom_call.1} parent=11 // pred_check_branch
          %267 = sbr.rel (%p265) target = $region32
        $region31: #{tpu_custom_call.1} parent=11 // pred_region
          _
        $region32: #{tpu_custom_call.1} parent=11 // pred_fallthru
          _
        // Predicated region
        $region33: #{tpu_custom_call.1} parent=11 // pred_check
          %p268 = pneg %p170
        $region34: #{tpu_custom_call.1} parent=11 // pred_check_branch
          %270 = sbr.rel (%p268) target = $region36
        $region35: #{tpu_custom_call.1} parent=11 // pred_region
          _
        $region36: #{tpu_custom_call.1} parent=11 // pred_fallthru
          _
        // Predicated region
        $region37: #{tpu_custom_call.1} parent=11 // pred_check
          %p271 = pneg %p191
        $region38: #{tpu_custom_call.1} parent=11 // pred_check_branch
          %273 = sbr.rel (%p271) target = $region40
        $region39: #{tpu_custom_call.1} parent=11 // pred_region
          _
        $region40: #{tpu_custom_call.1} parent=11 // pred_fallthru
          _
        // Predicated region
        $region41: #{tpu_custom_call.1} parent=11 // pred_check
          %p274 = pneg %p212
        $region42: #{tpu_custom_call.1} parent=11 // pred_check_branch
          %276 = sbr.rel (%p274) target = $region44
        $region43: #{tpu_custom_call.1} parent=11 // pred_region
          _
        $region44: #{tpu_custom_call.1} parent=11 // pred_fallthru
          _
      $region12: #{tpu_custom_call.1} parent=5 // pred_fallthru
        _
      %p277 = scmp.lt.s32.totalorder %s18, 2
      // Predicated region
      $region45: #{tpu_custom_call.1} parent=5 // pred_check
        %p278 = pneg %p277
      $region46: #{tpu_custom_call.1} parent=5 // pred_check_branch
        %280 = sbr.rel (%p278) target = $region48
      $region47: #{tpu_custom_call.1} parent=5 // pred_region
        // Predicated region
        $region49: #{tpu_custom_call.1} parent=47 // pred_check
          %p281 = pneg %p38
        $region50: #{tpu_custom_call.1} parent=47 // pred_check_branch
          %283 = sbr.rel (%p281) target = $region52
        $region51: #{tpu_custom_call.1} parent=47 // pred_region
          %p284 = scmp.lt.s32.totalorder %s18, 1
          %s285 = scalar_select %p284, %s18, 1
          %s286 = smul.addr %s285, 5
          %s287 = smul.addr %s286, 4
          %s288 = scalar_lea.vmem %s0, %s287
        $region52: #{tpu_custom_call.1} parent=47 // pred_fallthru
          _
      $region48: #{tpu_custom_call.1} parent=5 // pred_fallthru
        _
      %p289 = scmp.le.s32.totalorder 1, %s18
      %p290 = scmp.lt.s32.totalorder %s18, 3
      %p291 = pnand %p289, %p290
      %p292 = pneg %p291
      // Predicated region
      $region53: #{tpu_custom_call.1} parent=5 // pred_check
        _
      $region54: #{tpu_custom_call.1} parent=5 // pred_check_branch
        %294 = sbr.rel (%p291) target = $region56
      $region55: #{tpu_custom_call.1} parent=5 // pred_region
        %s295 = ssub.s32 %s18, 1
        %p296 = scmp.lt.s32.totalorder %s23, 1
        %s297 = scalar_select %p296, %s23, 1
        %s298 = smul.addr %s297, 5
        %s299 = smul.addr %s298, 4
        %s300 = scalar_lea.vmem %s0, %s299
        %p301 = pneg %p44
        %p302 = pneg %p41
        %p303 = pneg %p65
        %p304 = pneg %p62
        %p305 = pneg %p86
        %p306 = pneg %p83
        %p307 = pneg %p107
        %p308 = pneg %p104
        %p309 = pneg %p128
        %p310 = pneg %p125
        %p311 = pneg %p149
        %p312 = pneg %p146
        %p313 = pneg %p170
        %p314 = pneg %p167
        %p315 = pneg %p191
        %p316 = pneg %p188
        %p317 = pneg %p212
        %p318 = pneg %p209
        %p319 = pneg %p238
        %p320 = pneg %p235
        %s321 = sand.u32 %s225, 1
        %s322 = scalar_lea.sflag [#allocation6], %s321
        %s323 = sand.u32 %s225, 1
        %s324 = smul.addr %s323, 16
        %s325 = scalar_lea.vmem [#allocation5], %s324
        %p326 = scmp.lt.s32.totalorder %s23, 1
        %s327 = scalar_select %p326, %s23, 1
        %s328 = smul.addr %s327, 5
        %s329 = smul.addr %s328, 4
        %s330 = scalar_lea.vmem %s0, %s329
        %vm332 = vcmask 1048520
        %333 = vst.msk [vmem:[#allocation2] sm:$0xff] %vm332, 0
        %vm334 = vcmask 138240
        %335 = vst.msk [vmem:[#allocation2 + $0x8] sm:$0xff] %vm334, 0
        %336 = vst.msk [vmem:[#allocation2 + $0x10] sm:$0xff] %vm332, 0
        %337 = vst.msk [vmem:[#allocation2 + $0x18] sm:$0xff] %vm334, 0
        %338 = vst.msk [vmem:[#allocation3] sm:$0xff] %vm332, 0
        %339 = vst.msk [vmem:[#allocation3 + $0x8] sm:$0xff] %vm334, 0
        %340 = vst.msk [vmem:[#allocation3 + $0x10] sm:$0xff] %vm332, 0
        %341 = vst.msk [vmem:[#allocation3 + $0x18] sm:$0xff] %vm334, 0
        %342 = vst.msk [vmem:[#allocation4] sm:$0xff] %vm332, 0
        %343 = vst.msk [vmem:[#allocation4 + $0x8] sm:$0xff] %vm334, 0
        %344 = vst.msk [vmem:[#allocation4 + $0x10] sm:$0xff] %vm332, 0
        %345 = vst.msk [vmem:[#allocation4 + $0x18] sm:$0xff] %vm334, 0
        %v346 = vld [vmem:[%s330] sm:$0xf]
        %v347 = vld [vmem:[%s330 + $0x4] sm:$0xf]
        %v348 = vld [vmem:[%s330 + $0x8] sm:$0xf]
        %v349 = vld [vmem:[%s330 + $0xc] sm:$0xf]
        %v350 = vld [vmem:[%s330 + $0x10] sm:$0x3]
        %v351 = vld [vmem:[%s1] sm:$0xf]
        %v352 = vld [vmem:[%s1 + $0x4] sm:$0xf]
        %v353 = vld [vmem:[%s1 + $0x8] sm:$0xf]
        %v354 = vld [vmem:[%s1 + $0xc] sm:$0xf]
        %v355 = vld [vmem:[%s2] sm:$0xff]
        %v356 = vld [vmem:[%s2 + $0x8] sm:$0xff]
        %v357 = vld [vmem:[%s2 + $0x10] sm:$0xff]
        %v358 = vld [vmem:[%s2 + $0x18] sm:$0xff]
        %360 = vset.pattern.permute.xlu0 0
        %361 = vperm.xlu0 %360, %v355
        %v362 = vpop.permute.xlu0 %361
        %365 = vset.pattern.permute.xlu0 0
        %366 = vperm.xlu0 %365, %v356
        %v367 = vpop.permute.xlu0 %366
        %370 = vset.pattern.permute.xlu0 0
        %371 = vperm.xlu0 %370, %v357
        %v372 = vpop.permute.xlu0 %371
        %375 = vset.pattern.permute.xlu0 0
        %376 = vperm.xlu0 %375, %v358
        %v377 = vpop.permute.xlu0 %376
        %v383 = vunpack.c.l.b16 %v351
        %v384 = vunpack.c.l.b16 %v352
        %v385 = vunpack.c.l.b16 %v353
        %v386 = vunpack.c.l.b16 %v354
        %v387 = vpack.c.b16 %v384, %v383
        %v388 = vpack.c.b16 %v386, %v385
        %v394 = vunpack.c.l.b16 %v346
        %v395 = vunpack.c.l.b16 %v347
        %v396 = vunpack.c.l.b16 %v348
        %v397 = vunpack.c.l.b16 %v349
        %v398 = vunpack.c.l.b16 %v350
        %v399 = vpack.c.b16 %v395, %v394
        %v400 = vpack.c.b16 %v397, %v396
        %v401 = vpack.c.b16 %v398, %v398
        %vm404 = vcmask 293888
        %v406 = vsel %vm404, %v387, 0
        %v409 = vsel %vm404, %v388, 0
        %vm411 = vcmask 1041408
        %v413 = vsel %vm411, %v401, 0
        %415 = vmatprep.subr.bf16.mxu0 0
        %416 = vmatpush1.bf16.msra.mxu0 %v399
        %417 = vmatprep.subr.bf16.mxu0 0
        %418 = vmatpush1.bf16.msra.mxu0 %v400
        %419 = vmatprep.subr.bf16.mxu0 0
        %420 = vmatpush1.bf16.msra.mxu0 %v413
        %421 = vmatprep.subr.bf16.mxu0 0
        %422 = vmatpush1.bf16.msra.mxu0 0
        %423 = vmatprep.subr.bf16.mxu0 0
        %424 = vmatpush1.bf16.msra.mxu0 0
        %425 = vmatprep.subr.bf16.mxu0 0
        %426 = vmatpush1.bf16.msra.mxu0 0
        %427 = vmatprep.subr.bf16.mxu0 0
        %428 = vmatpush1.bf16.msra.mxu0 0
        %429 = vmatprep.subr.bf16.mxu0 0
        %430 = vmatpush1.bf16.msra.mxu0 0
        %431 = vmatprep.subr.bf16.mxu0 0
        %432 = vmatpush1.bf16.msra.mxu0 0
        %433 = vmatprep.subr.bf16.mxu0 0
        %434 = vmatpush1.bf16.msra.mxu0 0
        %435 = vmatprep.subr.bf16.mxu0 0
        %436 = vmatpush1.bf16.msra.mxu0 0
        %437 = vmatprep.subr.bf16.mxu0 0
        %438 = vmatpush1.bf16.msra.mxu0 0
        %439 = vmatprep.subr.bf16.mxu0 0
        %440 = vmatpush1.bf16.msra.mxu0 0
        %441 = vmatprep.subr.bf16.mxu0 0
        %442 = vmatpush1.bf16.msra.mxu0 0
        %443 = vmatprep.subr.bf16.mxu0 0
        %444 = vmatpush1.bf16.msra.mxu0 0
        %445 = vmatprep.subr.bf16.mxu0 0
        %446 = vmatpush1.bf16.msra.mxu0 0
        %447 = vmatprep.mubr.bf16.mxu0 0
        %448 = vmatmul.mubr.bf16.gmra.mrb[0].mxu0 %v406
        %v449 = vpop.f32.mrb[0].mxu0
        %v450 = vadd.f32 %v362, %v449
        %v451 = vpop.f32.mrb[0].mxu0
        %v452 = vpop.f32.mrb[0].mxu0
        %v453 = vadd.f32 %v367, %v452
        %v454 = vpop.f32.mrb[0].mxu0
        %455 = vmatprep.mubr.bf16.mxu0 0
        %456 = vmatmul.mubr.bf16.gmra.mrb[0].mxu0 %v409
        %v457 = vpop.f32.mrb[0].mxu0
        %v458 = vadd.f32 %v372, %v457
        %v459 = vpop.f32.mrb[0].mxu0
        %v460 = vpop.f32.mrb[0].mxu0
        %v461 = vadd.f32 %v377, %v460
        %v462 = vpop.f32.mrb[0].mxu0
        %463 = vdwg.mxu0
        %v464 = vmax.f32 %v450, 0.0
        %v465 = vmax.f32 %v453, 0.0
        %v466 = vmax.f32 %v458, 0.0
        %v467 = vmax.f32 %v461, 0.0
        %v468 = vpack.c.bf16 %v465, %v464
        %v469 = vpack.c.bf16 %v467, %v466
        %vm470 = vcmask 990208
        %471 = vst.msk [vmem:[#allocation2] sm:$0xff] %vm470, %v468
        %472 = vst.msk [vmem:[#allocation2 + $0x10] sm:$0xff] %vm470, %v469
        %v473 = vld [vmem:[#allocation2] sm:$0xff]
        %v474 = vld [vmem:[#allocation2 + $0x10] sm:$0xff]
        %v475 = vld [vmem:[#allocation2 + $0x8] sm:$0xff]
        %v476 = vld [vmem:[#allocation2 + $0x18] sm:$0xff]
        %479 = vrot.lane.b32.xlu0 %v473, 127
        %v480 = vpop.permute.xlu0 %479
        %481 = vrot.lane.b32.xlu0 %v474, 127
        %v482 = vpop.permute.xlu0 %481
        %485 = vrot.lane.b32.xlu0 %v473, 126
        %v486 = vpop.permute.xlu0 %485
        %487 = vrot.lane.b32.xlu0 %v474, 126
        %v488 = vpop.permute.xlu0 %487
        %493 = vrot.lane.b32.xlu0 %v473, 117
        %v494 = vpop.permute.xlu0 %493
        %495 = vrot.lane.b32.xlu0 %v475, 117
        %v496 = vpop.permute.xlu0 %495
        %497 = vrot.lane.b32.xlu0 %v474, 117
        %v498 = vpop.permute.xlu0 %497
        %499 = vrot.lane.b32.xlu0 %v476, 117
        %v500 = vpop.permute.xlu0 %499
        %vm501 = vcmask 957440
        %v502 = vsel %vm501, %v494, %v496
        %v503 = vsel %vm501, %v498, %v500
        %506 = vrot.lane.b32.xlu0 %v473, 116
        %v507 = vpop.permute.xlu0 %506
        %508 = vrot.lane.b32.xlu0 %v475, 116
        %v509 = vpop.permute.xlu0 %508
        %510 = vrot.lane.b32.xlu0 %v474, 116
        %v511 = vpop.permute.xlu0 %510
        %512 = vrot.lane.b32.xlu0 %v476, 116
        %v513 = vpop.permute.xlu0 %512
        %vm514 = vcmask 949248
        %v515 = vsel %vm514, %v507, %v509
        %v516 = vsel %vm514, %v511, %v513
        %519 = vrot.lane.b32.xlu0 %v473, 115
        %v520 = vpop.permute.xlu0 %519
        %521 = vrot.lane.b32.xlu0 %v475, 115
        %v522 = vpop.permute.xlu0 %521
        %523 = vrot.lane.b32.xlu0 %v474, 115
        %v524 = vpop.permute.xlu0 %523
        %525 = vrot.lane.b32.xlu0 %v476, 115
        %v526 = vpop.permute.xlu0 %525
        %vm527 = vcmask 941056
        %v528 = vsel %vm527, %v520, %v522
        %v529 = vsel %vm527, %v524, %v526
        %532 = vrot.lane.b32.xlu0 %v473, 106
        %v533 = vpop.permute.xlu0 %532
        %534 = vrot.lane.b32.xlu0 %v475, 106
        %v535 = vpop.permute.xlu0 %534
        %536 = vrot.lane.b32.xlu0 %v474, 106
        %v537 = vpop.permute.xlu0 %536
        %538 = vrot.lane.b32.xlu0 %v476, 106
        %v539 = vpop.permute.xlu0 %538
        %vm540 = vcmask 867328
        %v541 = vsel %vm540, %v533, %v535
        %v542 = vsel %vm540, %v537, %v539
        %545 = vrot.lane.b32.xlu0 %v473, 105
        %v546 = vpop.permute.xlu0 %545
        %547 = vrot.lane.b32.xlu0 %v475, 105
        %v548 = vpop.permute.xlu0 %547
        %549 = vrot.lane.b32.xlu0 %v474, 105
        %v550 = vpop.permute.xlu0 %549
        %551 = vrot.lane.b32.xlu0 %v476, 105
        %v552 = vpop.permute.xlu0 %551
        %vm553 = vcmask 859136
        %v554 = vsel %vm553, %v546, %v548
        %v555 = vsel %vm553, %v550, %v552
        %558 = vrot.lane.b32.xlu0 %v473, 104
        %v559 = vpop.permute.xlu0 %558
        %560 = vrot.lane.b32.xlu0 %v475, 104
        %v561 = vpop.permute.xlu0 %560
        %562 = vrot.lane.b32.xlu0 %v474, 104
        %v563 = vpop.permute.xlu0 %562
        %564 = vrot.lane.b32.xlu0 %v476, 104
        %v565 = vpop.permute.xlu0 %564
        %vm566 = vcmask 850944
        %v567 = vsel %vm566, %v559, %v561
        %v568 = vsel %vm566, %v563, %v565
        %v571 = vld [vmem:[%s3] sm:$0xff]
        %v572 = vld [vmem:[%s3 + $0x8] sm:$0xf]
        %v573 = vld [vmem:[%s3 + $0xc] sm:$0xff]
        %v574 = vld [vmem:[%s3 + $0x14] sm:$0xf]
        %v575 = vld [vmem:[%s3 + $0x18] sm:$0xff]
        %v576 = vld [vmem:[%s3 + $0x20] sm:$0xf]
        %v577 = vld [vmem:[%s3 + $0x24] sm:$0xff]
        %v578 = vld [vmem:[%s3 + $0x2c] sm:$0xf]
        %v579 = vld [vmem:[%s4] sm:$0xff]
        %v580 = vld [vmem:[%s4 + $0x8] sm:$0xff]
        %v581 = vld [vmem:[%s4 + $0x10] sm:$0xff]
        %v582 = vld [vmem:[%s4 + $0x18] sm:$0xff]
        %584 = vset.pattern.permute.xlu0 0
        %585 = vperm.xlu0 %584, %v579
        %v586 = vpop.permute.xlu0 %585
        %589 = vset.pattern.permute.xlu0 0
        %590 = vperm.xlu0 %589, %v580
        %v591 = vpop.permute.xlu0 %590
        %594 = vset.pattern.permute.xlu0 0
        %595 = vperm.xlu0 %594, %v581
        %v596 = vpop.permute.xlu0 %595
        %599 = vset.pattern.permute.xlu0 0
        %600 = vperm.xlu0 %599, %v582
        %v601 = vpop.permute.xlu0 %600
        %v611 = vunpack.c.l.b16 %v571
        %v612 = vunpack.c.h.b16 %v571
        %v613 = vunpack.c.l.b16 %v572
        %v614 = vunpack.c.l.b16 %v573
        %v615 = vunpack.c.h.b16 %v573
        %v616 = vunpack.c.l.b16 %v574
        %v617 = vunpack.c.l.b16 %v575
        %v618 = vunpack.c.h.b16 %v575
        %v619 = vunpack.c.l.b16 %v576
        %v620 = vunpack.c.l.b16 %v577
        %v621 = vunpack.c.h.b16 %v577
        %v622 = vunpack.c.l.b16 %v578
        %v623 = vpack.c.b16 %v614, %v611
        %v624 = vpack.c.b16 %v615, %v612
        %v625 = vpack.c.b16 %v616, %v613
        %v626 = vpack.c.b16 %v620, %v617
        %v627 = vpack.c.b16 %v621, %v618
        %v628 = vpack.c.b16 %v622, %v619
        %vm633 = vcmask 261120
        %v635 = vsel %vm633, %v625, 0
        %v638 = vsel %vm633, %v628, 0
        %640 = vmatprep.subr.bf16.mxu0 0
        %641 = vmatpush1.bf16.msra.mxu0 %v473
        %642 = vmatprep.subr.bf16.mxu0 0
        %643 = vmatpush1.bf16.msra.mxu0 %v474
        %644 = vmatprep.subr.bf16.mxu0 0
        %645 = vmatpush1.bf16.msra.mxu0 %v480
        %646 = vmatprep.subr.bf16.mxu0 0
        %647 = vmatpush1.bf16.msra.mxu0 %v482
        %648 = vmatprep.subr.bf16.mxu0 0
        %649 = vmatpush1.bf16.msra.mxu0 %v486
        %650 = vmatprep.subr.bf16.mxu0 0
        %651 = vmatpush1.bf16.msra.mxu0 %v488
        %652 = vmatprep.subr.bf16.mxu0 0
        %653 = vmatpush1.bf16.msra.mxu0 %v502
        %654 = vmatprep.subr.bf16.mxu0 0
        %655 = vmatpush1.bf16.msra.mxu0 %v503
        %656 = vmatprep.subr.bf16.mxu0 0
        %657 = vmatpush1.bf16.msra.mxu0 %v515
        %658 = vmatprep.subr.bf16.mxu0 0
        %659 = vmatpush1.bf16.msra.mxu0 %v516
        %660 = vmatprep.subr.bf16.mxu0 0
        %661 = vmatpush1.bf16.msra.mxu0 %v528
        %662 = vmatprep.subr.bf16.mxu0 0
        %663 = vmatpush1.bf16.msra.mxu0 %v529
        %664 = vmatprep.subr.bf16.mxu0 0
        %665 = vmatpush1.bf16.msra.mxu0 %v541
        %666 = vmatprep.subr.bf16.mxu0 0
        %667 = vmatpush1.bf16.msra.mxu0 %v542
        %668 = vmatprep.subr.bf16.mxu0 0
        %669 = vmatpush1.bf16.msra.mxu0 %v554
        %670 = vmatprep.subr.bf16.mxu0 0
        %671 = vmatpush1.bf16.msra.mxu0 %v555
        %672 = vmatprep.mubr.bf16.mxu0 %v624
        %673 = vmatmul.mubr.bf16.gmra.mrb[0].mxu0 %v623
        %v674 = vpop.f32.mrb[0].mxu0
        %v675 = vadd.f32 %v586, %v674
        %v676 = vpop.f32.mrb[0].mxu0
        %v677 = vpop.f32.mrb[0].mxu0
        %v678 = vadd.f32 %v591, %v677
        %v679 = vpop.f32.mrb[0].mxu0
        %680 = vmatprep.mubr.bf16.mxu0 %v627
        %681 = vmatmul.mubr.bf16.gmra.mrb[0].mxu0 %v626
        %v682 = vpop.f32.mrb[0].mxu0
        %v683 = vadd.f32 %v596, %v682
        %v684 = vpop.f32.mrb[0].mxu0
        %v685 = vpop.f32.mrb[0].mxu0
        %v686 = vadd.f32 %v601, %v685
        %v687 = vpop.f32.mrb[0].mxu0
        %688 = vdwg.mxu0
        %689 = vmatprep.subr.bf16.mxu0 0
        %690 = vmatpush1.bf16.msra.mxu0 %v567
        %691 = vmatprep.subr.bf16.mxu0 0
        %692 = vmatpush1.bf16.msra.mxu0 %v568
        %693 = vmatprep.subr.bf16.mxu0 0
        %694 = vmatpush1.bf16.msra.mxu0 0
        %695 = vmatprep.subr.bf16.mxu0 0
        %696 = vmatpush1.bf16.msra.mxu0 0
        %697 = vmatprep.subr.bf16.mxu0 0
        %698 = vmatpush1.bf16.msra.mxu0 0
        %699 = vmatprep.subr.bf16.mxu0 0
        %700 = vmatpush1.bf16.msra.mxu0 0
        %701 = vmatprep.subr.bf16.mxu0 0
        %702 = vmatpush1.bf16.msra.mxu0 0
        %703 = vmatprep.subr.bf16.mxu0 0
        %704 = vmatpush1.bf16.msra.mxu0 0
        %705 = vmatprep.subr.bf16.mxu0 0
        %706 = vmatpush1.bf16.msra.mxu0 0
        %707 = vmatprep.subr.bf16.mxu0 0
        %708 = vmatpush1.bf16.msra.mxu0 0
        %709 = vmatprep.subr.bf16.mxu0 0
        %710 = vmatpush1.bf16.msra.mxu0 0
        %711 = vmatprep.subr.bf16.mxu0 0
        %712 = vmatpush1.bf16.msra.mxu0 0
        %713 = vmatprep.subr.bf16.mxu0 0
        %714 = vmatpush1.bf16.msra.mxu0 0
        %715 = vmatprep.subr.bf16.mxu0 0
        %716 = vmatpush1.bf16.msra.mxu0 0
        %717 = vmatprep.subr.bf16.mxu0 0
        %718 = vmatpush1.bf16.msra.mxu0 0
        %719 = vmatprep.subr.bf16.mxu0 0
        %720 = vmatpush1.bf16.msra.mxu0 0
        %721 = vmatprep.mubr.bf16.mxu0 0
        %722 = vmatmul.mubr.bf16.gmra.mrb[0].mxu0 %v635
        %v723 = vpop.f32.mrb[0].mxu0
        %v724 = vadd.f32 %v675, %v723
        %v725 = vpop.f32.mrb[0].mxu0
        %v726 = vpop.f32.mrb[0].mxu0
        %v727 = vadd.f32 %v678, %v726
        %v728 = vpop.f32.mrb[0].mxu0
        %729 = vmatprep.mubr.bf16.mxu0 0
        %730 = vmatmul.mubr.bf16.gmra.mrb[0].mxu0 %v638
        %v731 = vpop.f32.mrb[0].mxu0
        %v732 = vadd.f32 %v683, %v731
        %v733 = vpop.f32.mrb[0].mxu0
        %v734 = vpop.f32.mrb[0].mxu0
        %v735 = vadd.f32 %v686, %v734
        %v736 = vpop.f32.mrb[0].mxu0
        %737 = vdwg.mxu0
        %v738 = vmax.f32 %v724, 0.0
        %v739 = vmax.f32 %v727, 0.0
        %v740 = vmax.f32 %v732, 0.0
        %v741 = vmax.f32 %v735, 0.0
        %v742 = vpack.c.bf16 %v739, %v738
        %v743 = vpack.c.bf16 %v741, %v740
        %744 = vst.msk [vmem:[#allocation3] sm:$0xff] %vm470, %v742
        %745 = vst.msk [vmem:[#allocation3 + $0x10] sm:$0xff] %vm470, %v743
        %v746 = vld [vmem:[#allocation3] sm:$0xff]
        %v747 = vld [vmem:[#allocation3 + $0x10] sm:$0xff]
        %v748 = vld [vmem:[#allocation3 + $0x8] sm:$0xff]
        %v749 = vld [vmem:[#allocation3 + $0x18] sm:$0xff]
        %752 = vrot.lane.b32.xlu0 %v746, 127
        %v753 = vpop.permute.xlu0 %752
        %754 = vrot.lane.b32.xlu0 %v747, 127
        %v755 = vpop.permute.xlu0 %754
        %758 = vrot.lane.b32.xlu0 %v746, 126
        %v759 = vpop.permute.xlu0 %758
        %760 = vrot.lane.b32.xlu0 %v747, 126
        %v761 = vpop.permute.xlu0 %760
        %766 = vrot.lane.b32.xlu0 %v746, 117
        %v767 = vpop.permute.xlu0 %766
        %768 = vrot.lane.b32.xlu0 %v748, 117
        %v769 = vpop.permute.xlu0 %768
        %770 = vrot.lane.b32.xlu0 %v747, 117
        %v771 = vpop.permute.xlu0 %770
        %772 = vrot.lane.b32.xlu0 %v749, 117
        %v773 = vpop.permute.xlu0 %772
        %v774 = vsel %vm501, %v767, %v769
        %v775 = vsel %vm501, %v771, %v773
        %778 = vrot.lane.b32.xlu0 %v746, 116
        %v779 = vpop.permute.xlu0 %778
        %780 = vrot.lane.b32.xlu0 %v748, 116
        %v781 = vpop.permute.xlu0 %780
        %782 = vrot.lane.b32.xlu0 %v747, 116
        %v783 = vpop.permute.xlu0 %782
        %784 = vrot.lane.b32.xlu0 %v749, 116
        %v785 = vpop.permute.xlu0 %784
        %v786 = vsel %vm514, %v779, %v781
        %v787 = vsel %vm514, %v783, %v785
        %790 = vrot.lane.b32.xlu0 %v746, 115
        %v791 = vpop.permute.xlu0 %790
        %792 = vrot.lane.b32.xlu0 %v748, 115
        %v793 = vpop.permute.xlu0 %792
        %794 = vrot.lane.b32.xlu0 %v747, 115
        %v795 = vpop.permute.xlu0 %794
        %796 = vrot.lane.b32.xlu0 %v749, 115
        %v797 = vpop.permute.xlu0 %796
        %v798 = vsel %vm527, %v791, %v793
        %v799 = vsel %vm527, %v795, %v797
        %802 = vrot.lane.b32.xlu0 %v746, 106
        %v803 = vpop.permute.xlu0 %802
        %804 = vrot.lane.b32.xlu0 %v748, 106
        %v805 = vpop.permute.xlu0 %804
        %806 = vrot.lane.b32.xlu0 %v747, 106
        %v807 = vpop.permute.xlu0 %806
        %808 = vrot.lane.b32.xlu0 %v749, 106
        %v809 = vpop.permute.xlu0 %808
        %v810 = vsel %vm540, %v803, %v805
        %v811 = vsel %vm540, %v807, %v809
        %814 = vrot.lane.b32.xlu0 %v746, 105
        %v815 = vpop.permute.xlu0 %814
        %816 = vrot.lane.b32.xlu0 %v748, 105
        %v817 = vpop.permute.xlu0 %816
        %818 = vrot.lane.b32.xlu0 %v747, 105
        %v819 = vpop.permute.xlu0 %818
        %820 = vrot.lane.b32.xlu0 %v749, 105
        %v821 = vpop.permute.xlu0 %820
        %v822 = vsel %vm553, %v815, %v817
        %v823 = vsel %vm553, %v819, %v821
        %826 = vrot.lane.b32.xlu0 %v746, 104
        %v827 = vpop.permute.xlu0 %826
        %828 = vrot.lane.b32.xlu0 %v748, 104
        %v829 = vpop.permute.xlu0 %828
        %830 = vrot.lane.b32.xlu0 %v747, 104
        %v831 = vpop.permute.xlu0 %830
        %832 = vrot.lane.b32.xlu0 %v749, 104
        %v833 = vpop.permute.xlu0 %832
        %v834 = vsel %vm566, %v827, %v829
        %v835 = vsel %vm566, %v831, %v833
        %v838 = vld [vmem:[%s5] sm:$0xff]
        %v839 = vld [vmem:[%s5 + $0x8] sm:$0xf]
        %v840 = vld [vmem:[%s5 + $0xc] sm:$0xff]
        %v841 = vld [vmem:[%s5 + $0x14] sm:$0xf]
        %v842 = vld [vmem:[%s5 + $0x18] sm:$0xff]
        %v843 = vld [vmem:[%s5 + $0x20] sm:$0xf]
        %v844 = vld [vmem:[%s5 + $0x24] sm:$0xff]
        %v845 = vld [vmem:[%s5 + $0x2c] sm:$0xf]
        %v846 = vld [vmem:[%s6] sm:$0xff]
        %v847 = vld [vmem:[%s6 + $0x8] sm:$0xff]
        %v848 = vld [vmem:[%s6 + $0x10] sm:$0xff]
        %v849 = vld [vmem:[%s6 + $0x18] sm:$0xff]
        %851 = vset.pattern.permute.xlu0 0
        %852 = vperm.xlu0 %851, %v846
        %v853 = vpop.permute.xlu0 %852
        %856 = vset.pattern.permute.xlu0 0
        %857 = vperm.xlu0 %856, %v847
        %v858 = vpop.permute.xlu0 %857
        %861 = vset.pattern.permute.xlu0 0
        %862 = vperm.xlu0 %861, %v848
        %v863 = vpop.permute.xlu0 %862
        %866 = vset.pattern.permute.xlu0 0
        %867 = vperm.xlu0 %866, %v849
        %v868 = vpop.permute.xlu0 %867
        %v878 = vunpack.c.l.b16 %v838
        %v879 = vunpack.c.h.b16 %v838
        %v880 = vunpack.c.l.b16 %v839
        %v881 = vunpack.c.l.b16 %v840
        %v882 = vunpack.c.h.b16 %v840
        %v883 = vunpack.c.l.b16 %v841
        %v884 = vunpack.c.l.b16 %v842
        %v885 = vunpack.c.h.b16 %v842
        %v886 = vunpack.c.l.b16 %v843
        %v887 = vunpack.c.l.b16 %v844
        %v888 = vunpack.c.h.b16 %v844
        %v889 = vunpack.c.l.b16 %v845
        %v890 = vpack.c.b16 %v881, %v878
        %v891 = vpack.c.b16 %v882, %v879
        %v892 = vpack.c.b16 %v883, %v880
        %v893 = vpack.c.b16 %v887, %v884
        %v894 = vpack.c.b16 %v888, %v885
        %v895 = vpack.c.b16 %v889, %v886
        %v901 = vsel %vm633, %v892, 0
        %v904 = vsel %vm633, %v895, 0
        %906 = vmatprep.subr.bf16.mxu0 0
        %907 = vmatpush1.bf16.msra.mxu0 %v746
        %908 = vmatprep.subr.bf16.mxu0 0
        %909 = vmatpush1.bf16.msra.mxu0 %v747
        %910 = vmatprep.subr.bf16.mxu0 0
        %911 = vmatpush1.bf16.msra.mxu0 %v753
        %912 = vmatprep.subr.bf16.mxu0 0
        %913 = vmatpush1.bf16.msra.mxu0 %v755
        %914 = vmatprep.subr.bf16.mxu0 0
        %915 = vmatpush1.bf16.msra.mxu0 %v759
        %916 = vmatprep.subr.bf16.mxu0 0
        %917 = vmatpush1.bf16.msra.mxu0 %v761
        %918 = vmatprep.subr.bf16.mxu0 0
        %919 = vmatpush1.bf16.msra.mxu0 %v774
        %920 = vmatprep.subr.bf16.mxu0 0
        %921 = vmatpush1.bf16.msra.mxu0 %v775
        %922 = vmatprep.subr.bf16.mxu0 0
        %923 = vmatpush1.bf16.msra.mxu0 %v786
        %924 = vmatprep.subr.bf16.mxu0 0
        %925 = vmatpush1.bf16.msra.mxu0 %v787
        %926 = vmatprep.subr.bf16.mxu0 0
        %927 = vmatpush1.bf16.msra.mxu0 %v798
        %928 = vmatprep.subr.bf16.mxu0 0
        %929 = vmatpush1.bf16.msra.mxu0 %v799
        %930 = vmatprep.subr.bf16.mxu0 0
        %931 = vmatpush1.bf16.msra.mxu0 %v810
        %932 = vmatprep.subr.bf16.mxu0 0
        %933 = vmatpush1.bf16.msra.mxu0 %v811
        %934 = vmatprep.subr.bf16.mxu0 0
        %935 = vmatpush1.bf16.msra.mxu0 %v822
        %936 = vmatprep.subr.bf16.mxu0 0
        %937 = vmatpush1.bf16.msra.mxu0 %v823
        %938 = vmatprep.mubr.bf16.mxu0 %v891
        %939 = vmatmul.mubr.bf16.gmra.mrb[0].mxu0 %v890
        %v940 = vpop.f32.mrb[0].mxu0
        %v941 = vadd.f32 %v853, %v940
        %v942 = vpop.f32.mrb[0].mxu0
        %v943 = vpop.f32.mrb[0].mxu0
        %v944 = vadd.f32 %v858, %v943
        %v945 = vpop.f32.mrb[0].mxu0
        %946 = vmatprep.mubr.bf16.mxu0 %v894
        %947 = vmatmul.mubr.bf16.gmra.mrb[0].mxu0 %v893
        %v948 = vpop.f32.mrb[0].mxu0
        %v949 = vadd.f32 %v863, %v948
        %v950 = vpop.f32.mrb[0].mxu0
        %v951 = vpop.f32.mrb[0].mxu0
        %v952 = vadd.f32 %v868, %v951
        %v953 = vpop.f32.mrb[0].mxu0
        %954 = vdwg.mxu0
        %955 = vmatprep.subr.bf16.mxu0 0
        %956 = vmatpush1.bf16.msra.mxu0 %v834
        %957 = vmatprep.subr.bf16.mxu0 0
        %958 = vmatpush1.bf16.msra.mxu0 %v835
        %959 = vmatprep.subr.bf16.mxu0 0
        %960 = vmatpush1.bf16.msra.mxu0 0
        %961 = vmatprep.subr.bf16.mxu0 0
        %962 = vmatpush1.bf16.msra.mxu0 0
        %963 = vmatprep.subr.bf16.mxu0 0
        %964 = vmatpush1.bf16.msra.mxu0 0
        %965 = vmatprep.subr.bf16.mxu0 0
        %966 = vmatpush1.bf16.msra.mxu0 0
        %967 = vmatprep.subr.bf16.mxu0 0
        %968 = vmatpush1.bf16.msra.mxu0 0
        %969 = vmatprep.subr.bf16.mxu0 0
        %970 = vmatpush1.bf16.msra.mxu0 0
        %971 = vmatprep.subr.bf16.mxu0 0
        %972 = vmatpush1.bf16.msra.mxu0 0
        %973 = vmatprep.subr.bf16.mxu0 0
        %974 = vmatpush1.bf16.msra.mxu0 0
        %975 = vmatprep.subr.bf16.mxu0 0
        %976 = vmatpush1.bf16.msra.mxu0 0
        %977 = vmatprep.subr.bf16.mxu0 0
        %978 = vmatpush1.bf16.msra.mxu0 0
        %979 = vmatprep.subr.bf16.mxu0 0
        %980 = vmatpush1.bf16.msra.mxu0 0
        %981 = vmatprep.subr.bf16.mxu0 0
        %982 = vmatpush1.bf16.msra.mxu0 0
        %983 = vmatprep.subr.bf16.mxu0 0
        %984 = vmatpush1.bf16.msra.mxu0 0
        %985 = vmatprep.subr.bf16.mxu0 0
        %986 = vmatpush1.bf16.msra.mxu0 0
        %987 = vmatprep.mubr.bf16.mxu0 0
        %988 = vmatmul.mubr.bf16.gmra.mrb[0].mxu0 %v901
        %v989 = vpop.f32.mrb[0].mxu0
        %v990 = vadd.f32 %v941, %v989
        %v991 = vpop.f32.mrb[0].mxu0
        %v992 = vpop.f32.mrb[0].mxu0
        %v993 = vadd.f32 %v944, %v992
        %v994 = vpop.f32.mrb[0].mxu0
        %995 = vmatprep.mubr.bf16.mxu0 0
        %996 = vmatmul.mubr.bf16.gmra.mrb[0].mxu0 %v904
        %v997 = vpop.f32.mrb[0].mxu0
        %v998 = vadd.f32 %v949, %v997
        %v999 = vpop.f32.mrb[0].mxu0
        %v1000 = vpop.f32.mrb[0].mxu0
        %v1001 = vadd.f32 %v952, %v1000
        %v1002 = vpop.f32.mrb[0].mxu0
        %1003 = vdwg.mxu0
        %v1004 = vmax.f32 %v990, 0.0
        %v1005 = vmax.f32 %v993, 0.0
        %v1006 = vmax.f32 %v998, 0.0
        %v1007 = vmax.f32 %v1001, 0.0
        %v1008 = vpack.c.bf16 %v1005, %v1004
        %v1009 = vpack.c.bf16 %v1007, %v1006
        %1010 = vst.msk [vmem:[#allocation4] sm:$0xff] %vm470, %v1008
        %1011 = vst.msk [vmem:[#allocation4 + $0x10] sm:$0xff] %vm470, %v1009
        %v1012 = vld [vmem:[#allocation4] sm:$0xff]
        %v1013 = vld [vmem:[#allocation4 + $0x10] sm:$0xff]
        %v1014 = vld [vmem:[#allocation4 + $0x8] sm:$0xff]
        %v1015 = vld [vmem:[#allocation4 + $0x18] sm:$0xff]
        %1018 = vrot.lane.b32.xlu0 %v1012, 127
        %v1019 = vpop.permute.xlu0 %1018
        %1020 = vrot.lane.b32.xlu0 %v1013, 127
        %v1021 = vpop.permute.xlu0 %1020
        %1024 = vrot.lane.b32.xlu0 %v1012, 126
        %v1025 = vpop.permute.xlu0 %1024
        %1026 = vrot.lane.b32.xlu0 %v1013, 126
        %v1027 = vpop.permute.xlu0 %1026
        %1032 = vrot.lane.b32.xlu0 %v1012, 117
        %v1033 = vpop.permute.xlu0 %1032
        %1034 = vrot.lane.b32.xlu0 %v1014, 117
        %v1035 = vpop.permute.xlu0 %1034
        %1036 = vrot.lane.b32.xlu0 %v1013, 117
        %v1037 = vpop.permute.xlu0 %1036
        %1038 = vrot.lane.b32.xlu0 %v1015, 117
        %v1039 = vpop.permute.xlu0 %1038
        %v1040 = vsel %vm501, %v1033, %v1035
        %v1041 = vsel %vm501, %v1037, %v1039
        %1044 = vrot.lane.b32.xlu0 %v1012, 116
        %v1045 = vpop.permute.xlu0 %1044
        %1046 = vrot.lane.b32.xlu0 %v1014, 116
        %v1047 = vpop.permute.xlu0 %1046
        %1048 = vrot.lane.b32.xlu0 %v1013, 116
        %v1049 = vpop.permute.xlu0 %1048
        %1050 = vrot.lane.b32.xlu0 %v1015, 116
        %v1051 = vpop.permute.xlu0 %1050
        %v1052 = vsel %vm514, %v1045, %v1047
        %v1053 = vsel %vm514, %v1049, %v1051
        %1056 = vrot.lane.b32.xlu0 %v1012, 115
        %v1057 = vpop.permute.xlu0 %1056
        %1058 = vrot.lane.b32.xlu0 %v1014, 115
        %v1059 = vpop.permute.xlu0 %1058
        %1060 = vrot.lane.b32.xlu0 %v1013, 115
        %v1061 = vpop.permute.xlu0 %1060
        %1062 = vrot.lane.b32.xlu0 %v1015, 115
        %v1063 = vpop.permute.xlu0 %1062
        %v1064 = vsel %vm527, %v1057, %v1059
        %v1065 = vsel %vm527, %v1061, %v1063
        %1068 = vrot.lane.b32.xlu0 %v1012, 106
        %v1069 = vpop.permute.xlu0 %1068
        %1070 = vrot.lane.b32.xlu0 %v1014, 106
        %v1071 = vpop.permute.xlu0 %1070
        %1072 = vrot.lane.b32.xlu0 %v1013, 106
        %v1073 = vpop.permute.xlu0 %1072
        %1074 = vrot.lane.b32.xlu0 %v1015, 106
        %v1075 = vpop.permute.xlu0 %1074
        %v1076 = vsel %vm540, %v1069, %v1071
        %v1077 = vsel %vm540, %v1073, %v1075
        %1080 = vrot.lane.b32.xlu0 %v1012, 105
        %v1081 = vpop.permute.xlu0 %1080
        %1082 = vrot.lane.b32.xlu0 %v1014, 105
        %v1083 = vpop.permute.xlu0 %1082
        %1084 = vrot.lane.b32.xlu0 %v1013, 105
        %v1085 = vpop.permute.xlu0 %1084
        %1086 = vrot.lane.b32.xlu0 %v1015, 105
        %v1087 = vpop.permute.xlu0 %1086
        %v1088 = vsel %vm553, %v1081, %v1083
        %v1089 = vsel %vm553, %v1085, %v1087
        %1092 = vrot.lane.b32.xlu0 %v1012, 104
        %v1093 = vpop.permute.xlu0 %1092
        %1094 = vrot.lane.b32.xlu0 %v1014, 104
        %v1095 = vpop.permute.xlu0 %1094
        %1096 = vrot.lane.b32.xlu0 %v1013, 104
        %v1097 = vpop.permute.xlu0 %1096
        %1098 = vrot.lane.b32.xlu0 %v1015, 104
        %v1099 = vpop.permute.xlu0 %1098
        %v1100 = vsel %vm566, %v1093, %v1095
        %v1101 = vsel %vm566, %v1097, %v1099
        %v1104 = vld [vmem:[%s7] sm:$0xff]
        %v1105 = vld [vmem:[%s7 + $0x8] sm:$0xf]
        %v1106 = vld [vmem:[%s7 + $0xc] sm:$0xff]
        %v1107 = vld [vmem:[%s7 + $0x14] sm:$0xf]
        %v1108 = vld [vmem:[%s7 + $0x18] sm:$0xff]
        %v1109 = vld [vmem:[%s7 + $0x20] sm:$0xf]
        %v1110 = vld [vmem:[%s7 + $0x24] sm:$0xff]
        %v1111 = vld [vmem:[%s7 + $0x2c] sm:$0xf]
        %v1112 = vld [vmem:[%s8] sm:$0xff]
        %v1113 = vld [vmem:[%s8 + $0x8] sm:$0xff]
        %v1114 = vld [vmem:[%s8 + $0x10] sm:$0xff]
        %v1115 = vld [vmem:[%s8 + $0x18] sm:$0xff]
        %1117 = vset.pattern.permute.xlu0 0
        %1118 = vperm.xlu0 %1117, %v1112
        %v1119 = vpop.permute.xlu0 %1118
        %1122 = vset.pattern.permute.xlu0 0
        %1123 = vperm.xlu0 %1122, %v1113
        %v1124 = vpop.permute.xlu0 %1123
        %1127 = vset.pattern.permute.xlu0 0
        %1128 = vperm.xlu0 %1127, %v1114
        %v1129 = vpop.permute.xlu0 %1128
        %1132 = vset.pattern.permute.xlu0 0
        %1133 = vperm.xlu0 %1132, %v1115
        %v1134 = vpop.permute.xlu0 %1133
        %v1144 = vunpack.c.l.b16 %v1104
        %v1145 = vunpack.c.h.b16 %v1104
        %v1146 = vunpack.c.l.b16 %v1105
        %v1147 = vunpack.c.l.b16 %v1106
        %v1148 = vunpack.c.h.b16 %v1106
        %v1149 = vunpack.c.l.b16 %v1107
        %v1150 = vunpack.c.l.b16 %v1108
        %v1151 = vunpack.c.h.b16 %v1108
        %v1152 = vunpack.c.l.b16 %v1109
        %v1153 = vunpack.c.l.b16 %v1110
        %v1154 = vunpack.c.h.b16 %v1110
        %v1155 = vunpack.c.l.b16 %v1111
        %v1156 = vpack.c.b16 %v1147, %v1144
        %v1157 = vpack.c.b16 %v1148, %v1145
        %v1158 = vpack.c.b16 %v1149, %v1146
        %v1159 = vpack.c.b16 %v1153, %v1150
        %v1160 = vpack.c.b16 %v1154, %v1151
        %v1161 = vpack.c.b16 %v1155, %v1152
        %v1167 = vsel %vm633, %v1158, 0
        %v1170 = vsel %vm633, %v1161, 0
        %1172 = vmatprep.subr.bf16.mxu0 0
        %1173 = vmatpush1.bf16.msra.mxu0 %v1012
        %1174 = vmatprep.subr.bf16.mxu0 0
        %1175 = vmatpush1.bf16.msra.mxu0 %v1013
        %1176 = vmatprep.subr.bf16.mxu0 0
        %1177 = vmatpush1.bf16.msra.mxu0 %v1019
        %1178 = vmatprep.subr.bf16.mxu0 0
        %1179 = vmatpush1.bf16.msra.mxu0 %v1021
        %1180 = vmatprep.subr.bf16.mxu0 0
        %1181 = vmatpush1.bf16.msra.mxu0 %v1025
        %1182 = vmatprep.subr.bf16.mxu0 0
        %1183 = vmatpush1.bf16.msra.mxu0 %v1027
        %1184 = vmatprep.subr.bf16.mxu0 0
        %1185 = vmatpush1.bf16.msra.mxu0 %v1040
        %1186 = vmatprep.subr.bf16.mxu0 0
        %1187 = vmatpush1.bf16.msra.mxu0 %v1041
        %1188 = vmatprep.subr.bf16.mxu0 0
        %1189 = vmatpush1.bf16.msra.mxu0 %v1052
        %1190 = vmatprep.subr.bf16.mxu0 0
        %1191 = vmatpush1.bf16.msra.mxu0 %v1053
        %1192 = vmatprep.subr.bf16.mxu0 0
        %1193 = vmatpush1.bf16.msra.mxu0 %v1064
        %1194 = vmatprep.subr.bf16.mxu0 0
        %1195 = vmatpush1.bf16.msra.mxu0 %v1065
        %1196 = vmatprep.subr.bf16.mxu0 0
        %1197 = vmatpush1.bf16.msra.mxu0 %v1076
        %1198 = vmatprep.subr.bf16.mxu0 0
        %1199 = vmatpush1.bf16.msra.mxu0 %v1077
        %1200 = vmatprep.subr.bf16.mxu0 0
        %1201 = vmatpush1.bf16.msra.mxu0 %v1088
        %1202 = vmatprep.subr.bf16.mxu0 0
        %1203 = vmatpush1.bf16.msra.mxu0 %v1089
        %1204 = vmatprep.mubr.bf16.mxu0 %v1157
        %1205 = vmatmul.mubr.bf16.gmra.mrb[0].mxu0 %v1156
        %v1206 = vpop.f32.mrb[0].mxu0
        %v1207 = vadd.f32 %v1119, %v1206
        %v1208 = vpop.f32.mrb[0].mxu0
        %v1209 = vpop.f32.mrb[0].mxu0
        %v1210 = vadd.f32 %v1124, %v1209
        %v1211 = vpop.f32.mrb[0].mxu0
        %1212 = vmatprep.mubr.bf16.mxu0 %v1160
        %1213 = vmatmul.mubr.bf16.gmra.mrb[0].mxu0 %v1159
        %v1214 = vpop.f32.mrb[0].mxu0
        %v1215 = vadd.f32 %v1129, %v1214
        %v1216 = vpop.f32.mrb[0].mxu0
        %v1217 = vpop.f32.mrb[0].mxu0
        %v1218 = vadd.f32 %v1134, %v1217
        %v1219 = vpop.f32.mrb[0].mxu0
        %1220 = vdwg.mxu0
        %1221 = vmatprep.subr.bf16.mxu0 0
        %1222 = vmatpush1.bf16.msra.mxu0 %v1100
        %1223 = vmatprep.subr.bf16.mxu0 0
        %1224 = vmatpush1.bf16.msra.mxu0 %v1101
        %1225 = vmatprep.subr.bf16.mxu0 0
        %1226 = vmatpush1.bf16.msra.mxu0 0
        %1227 = vmatprep.subr.bf16.mxu0 0
        %1228 = vmatpush1.bf16.msra.mxu0 0
        %1229 = vmatprep.subr.bf16.mxu0 0
        %1230 = vmatpush1.bf16.msra.mxu0 0
        %1231 = vmatprep.subr.bf16.mxu0 0
        %1232 = vmatpush1.bf16.msra.mxu0 0
        %1233 = vmatprep.subr.bf16.mxu0 0
        %1234 = vmatpush1.bf16.msra.mxu0 0
        %1235 = vmatprep.subr.bf16.mxu0 0
        %1236 = vmatpush1.bf16.msra.mxu0 0
        %1237 = vmatprep.subr.bf16.mxu0 0
        %1238 = vmatpush1.bf16.msra.mxu0 0
        %1239 = vmatprep.subr.bf16.mxu0 0
        %1240 = vmatpush1.bf16.msra.mxu0 0
        %1241 = vmatprep.subr.bf16.mxu0 0
        %1242 = vmatpush1.bf16.msra.mxu0 0
        %1243 = vmatprep.subr.bf16.mxu0 0
        %1244 = vmatpush1.bf16.msra.mxu0 0
        %1245 = vmatprep.subr.bf16.mxu0 0
        %1246 = vmatpush1.bf16.msra.mxu0 0
        %1247 = vmatprep.subr.bf16.mxu0 0
        %1248 = vmatpush1.bf16.msra.mxu0 0
        %1249 = vmatprep.subr.bf16.mxu0 0
        %1250 = vmatpush1.bf16.msra.mxu0 0
        %1251 = vmatprep.subr.bf16.mxu0 0
        %1252 = vmatpush1.bf16.msra.mxu0 0
        %1253 = vmatprep.mubr.bf16.mxu0 0
        %1254 = vmatmul.mubr.bf16.gmra.mrb[0].mxu0 %v1167
        %v1255 = vpop.f32.mrb[0].mxu0
        %v1256 = vadd.f32 %v1207, %v1255
        %v1257 = vpop.f32.mrb[0].mxu0
        %v1258 = vpop.f32.mrb[0].mxu0
        %v1259 = vadd.f32 %v1210, %v1258
        %v1260 = vpop.f32.mrb[0].mxu0
        %1261 = vmatprep.mubr.bf16.mxu0 0
        %1262 = vmatmul.mubr.bf16.gmra.mrb[0].mxu0 %v1170
        %v1263 = vpop.f32.mrb[0].mxu0
        %v1264 = vadd.f32 %v1215, %v1263
        %v1265 = vpop.f32.mrb[0].mxu0
        %v1266 = vpop.f32.mrb[0].mxu0
        %v1267 = vadd.f32 %v1218, %v1266
        %v1268 = vpop.f32.mrb[0].mxu0
        %1269 = vdwg.mxu0
        %v1270 = vmax.f32 %v1256, 0.0
        %v1271 = vmax.f32 %v1259, 0.0
        %v1272 = vmax.f32 %v1264, 0.0
        %v1273 = vmax.f32 %v1267, 0.0
        %v1274 = vpack.c.bf16 %v1271, %v1270
        %v1275 = vpack.c.bf16 %v1273, %v1272
        %v1278 = vunpack.c.l.b16 %v1274
        %v1279 = vunpack.c.h.b16 %v1274
        %v1280 = vunpack.c.l.b16 %v1275
        %v1281 = vunpack.c.h.b16 %v1275
        %v1282 = vpack.c.b16 %v1278, %v1278
        %v1283 = vpack.c.b16 %v1279, %v1279
        %v1284 = vpack.c.b16 %v1280, %v1280
        %v1285 = vpack.c.b16 %v1281, %v1281
        %vm1290 = vcmask 986112
        %1291 = vst.msk [vmem:[%s325] sm:$0xf] %vm1290, %v1282
        %1292 = vst.msk [vmem:[%s325 + $0x4] sm:$0xf] %vm1290, %v1283
        %1293 = vst.msk [vmem:[%s325 + $0x8] sm:$0xf] %vm1290, %v1284
        %1294 = vst.msk [vmem:[%s325 + $0xc] sm:$0xf] %vm1290, %v1285
        %s1295 = sand.u32 %s225, 1
        %s1296 = scalar_lea.sflag [#allocation6], %s1295
        %s1297 = sand.u32 %s225, 1
        %s1298 = smul.addr %s1297, 16
        %s1299 = scalar_lea.vmem [#allocation5], %s1298
        // Predicated region
        $region57: #{tpu_custom_call.1} parent=55 // pred_check
          %p1300 = pneg %p235
        $region58: #{tpu_custom_call.1} parent=55 // pred_check_branch
          %1302 = sbr.rel (%p1300) target = $region60
        $region59: #{tpu_custom_call.1} parent=55 // pred_region
          %s1304 = ssub.s32 256, 256
          %1305 = vsyncadd %s1296, %s1304
          %s1306 = smul.addr %s23, 4
          %s1307 = smul.addr %s1306, 64
          %s1308 = scalar_lea.hbm %s9, %s1307
          %s1309 = sshll.u32 %s1299, 4
          %s1310 = int_to_ptr.vmem [resolvable:$true] %s1309
          %1315 = dma.vmem_to_hbm [thread:$0]  %s1310, 256, %s1308, %s1296, 64, 64, 4
        $region60: #{tpu_custom_call.1} parent=55 // pred_fallthru
          _
      $region56: #{tpu_custom_call.1} parent=5 // pred_fallthru
        _
      %p1316 = scmp.le.s32.totalorder 2, %s18
      // Predicated region
      $region61: #{tpu_custom_call.1} parent=5 // pred_check
        %p1317 = pneg %p1316
      $region62: #{tpu_custom_call.1} parent=5 // pred_check_branch
        %1319 = sbr.rel (%p1317) target = $region64
      $region63: #{tpu_custom_call.1} parent=5 // pred_region
        %s1320 = ssub.s32 %s18, 2
        // Predicated region
        $region65: #{tpu_custom_call.1} parent=63 // pred_check
          %p1321 = pneg %p241
        $region66: #{tpu_custom_call.1} parent=63 // pred_check_branch
          %1323 = sbr.rel (%p1321) target = $region68
        $region67: #{tpu_custom_call.1} parent=63 // pred_region
          %s1324 = sand.u32 %s226, 1
          %s1325 = scalar_lea.sflag [#allocation6], %s1324
          %s1326 = sand.u32 %s226, 1
          %s1327 = smul.addr %s1326, 16
          %s1328 = scalar_lea.vmem [#allocation5], %s1327
          %1329 = dma.done %s1325, 256
        $region68: #{tpu_custom_call.1} parent=63 // pred_fallthru
          _
      $region64: #{tpu_custom_call.1} parent=5 // pred_fallthru
        _
    $region6: #{tpu_custom_call.1} parent=1 // loop_footer
      %s22 = sadd.s32 1, %s18
    $region7: #{tpu_custom_call.1} parent=1 // loop_footer_branch
      %17 = sbr.rel target = $region3
    $region8: #{tpu_custom_call.1} parent=1 // loop_exit
      _
    %1330 = vsyncpa [#allocation6], 1
    %s1331 = scalar_lea.sflag [#allocation6], 1
    %1332 = vsyncpa %s1331, 1

</llo_original>
